<compile_context>
chip_gen: v7x
topology: tpu7x:2x2x1
jax: 0.10.0
libtpu: 0.0.40
codegen_flags: <defaults>
</compile_context>

<pallas_src>
import math

import jax
import jax.numpy as jnp
from jax import lax
from jax.experimental import pallas as pl
from jax.experimental.pallas import tpu as pltpu

K = 3          # kernel_size
PAD = 1        # padding
BN_EPS = 1e-5
LANES = 128


# ----------------------------- small helpers ---------------------------------

def _round_up(x, m):
    return ((x + m - 1) // m) * m


def _choose_tm(m, target):
    """Row tile: multiple of 8, <= target; keep grid >= 2 when possible (v7x dual-TC)."""
    tm = min((max(target, 8) // 8) * 8, _round_up(m, 8))
    if tm >= m and m > 8:          # grid would be 1 -> split so both TCs get work
        tm = max(8, (_round_up(m, 16) // 2 // 8) * 8)
    return tm


def _tpu_budget():
    """(vmem_limit_bytes, block_m) per generation.

    v7x (64 MiB physical VMEM per TC): ~48 MiB limit, 1024-row tiles.
    v5e/v6e (128 MiB physical):        ~96 MiB limit, 2048-row tiles.
    """
    try:
        cap = int(pltpu.get_tpu_info().vmem_capacity_bytes)
    except Exception:
        cap = 64 << 20                              # conservative fallback
    vmem_limit = min(int(cap * 0.75), cap - (16 << 20))
    block_m = 1024 if cap <= (64 << 20) else 2048
    return vmem_limit, block_m


def _gelu_tanh(x):
    # EUP-friendly tanh-form GELU (|err| vs exact erf-GELU < ~1e-3).
    return 0.5 * x * (1.0 + jnp.tanh(0.7978845608028654 * (x + 0.044715 * x * x * x)))


def _taps_to_mat(w_oihw):
    """Torch (O, Cin, 3, 3) -> (9*Cin, O); row index = (ki*3 + kj)*Cin + c."""
    o, cin = w_oihw.shape[:2]
    return jnp.transpose(w_oihw, (2, 3, 1, 0)).reshape(K * K * cin, o)


# ---- kernel A: projection matmul + bias + per-tile BN partial stats ----------

def _proj_stats_kernel(cols_ref, w_ref, b_ref, y_ref, stats_ref):
    # bf16 operands, f32 accumulation on the MXU; stats in f32, y stored bf16.
    y = jnp.dot(cols_ref[...], w_ref[...],
                preferred_element_type=jnp.float32) + b_ref[...]
    y_ref[...] = y.astype(y_ref.dtype)
    s = jnp.concatenate([jnp.sum(y, axis=0, keepdims=True),
                         jnp.sum(y * y, axis=0, keepdims=True)], axis=0)   # (2, O)
    stats_ref[...] = s[None, :, :]                                         # one store


def proj_matmul_stats(cols, w, b, *, tm, vmem_limit):
    m_pad, kd = cols.shape
    o = w.shape[1]
    g = m_pad // tm
    return pl.pallas_call(
        _proj_stats_kernel,
        out_shape=(jax.ShapeDtypeStruct((m_pad, o), jnp.bfloat16),
                   jax.ShapeDtypeStruct((g, 2, o), jnp.float32)),
        grid=(g,),
        in_specs=[
            pl.BlockSpec((tm, kd), lambda i: (i, 0)),
            # weights/bias: constant index_map -> fetched once; single-buffered.
            pl.BlockSpec((kd, o), lambda i: (0, 0), pipeline_mode=pl.Buffered(1)),
            pl.BlockSpec((1, o), lambda i: (0, 0), pipeline_mode=pl.Buffered(1)),
        ],
        out_specs=(pl.BlockSpec((tm, o), lambda i: (i, 0)),
                   pl.BlockSpec((1, 2, o), lambda i: (i, 0, 0))),
        compiler_params=pltpu.CompilerParams(
            dimension_semantics=("parallel",), vmem_limit_bytes=vmem_limit),
    )(cols, w, b)


# ----------------- kernel B: BatchNorm affine + GELU (in place) ---------------

def _bn_gelu_kernel(y_ref, scale_ref, shift_ref, out_ref):
    y = y_ref[...].astype(jnp.float32)
    out_ref[...] = _gelu_tanh(y * scale_ref[...] + shift_ref[...]).astype(out_ref.dtype)


def bn_gelu(y, scale, shift, *, tm, vmem_limit):
    m_pad, o = y.shape
    return pl.pallas_call(
        _bn_gelu_kernel,
        out_shape=jax.ShapeDtypeStruct((m_pad, o), y.dtype),
        grid=(m_pad // tm,),
        in_specs=[
            pl.BlockSpec((tm, o), lambda i: (i, 0)),
            pl.BlockSpec((1, o), lambda i: (0, 0), pipeline_mode=pl.Buffered(1)),
            pl.BlockSpec((1, o), lambda i: (0, 0), pipeline_mode=pl.Buffered(1)),
        ],
        out_specs=pl.BlockSpec((tm, o), lambda i: (i, 0)),
        input_output_aliases={0: 0},        # overwrite y in place (same shape/dtype)
        compiler_params=pltpu.CompilerParams(
            dimension_semantics=("parallel",), vmem_limit_bytes=vmem_limit),
    )(y, scale, shift)


# ------------------- deformable bilinear sampling (plain JAX) -----------------

def _bilinear_sample_cols(x_nhwc, offset, modulator):
    """Deformable 3x3 bilinear sampling, torchvision deform_conv2d semantics.

    offset:    (N, H, W, 9, 2) (dy, dx) per tap; modulator: (N, H, W, 9).
    returns:   (N*H*W, 9*Cin) f32, tap-major / channel-minor row layout.
    """
    # TODO(synk): the per-pixel data-dependent gather has no clean static-BlockSpec
    # Pallas form; kept in XLA. For modest H*W it could be recast as an in-kernel
    # one-hot (tm, H*W) x (H*W, Cin) MXU matmul fused with the projection kernel.
    n, h, w, c = x_nhwc.shape
    dy = offset[..., 0]
    dx = offset[..., 1]
    hh = jnp.arange(h, dtype=jnp.float32).reshape(1, h, 1, 1)
    ww = jnp.arange(w, dtype=jnp.float32).reshape(1, 1, w, 1)
    ki = (jnp.arange(K * K, dtype=jnp.float32) // K).reshape(1, 1, 1, K * K)
    kj = (jnp.arange(K * K, dtype=jnp.float32) % K).reshape(1, 1, 1, K * K)
    py = hh - PAD + ki + dy                        # (N, H, W, 9)
    px = ww - PAD + kj + dx
    y0f, x0f = jnp.floor(py), jnp.floor(px)
    ly, lx = py - y0f, px - x0f
    y0, x0 = y0f.astype(jnp.int32), x0f.astype(jnp.int32)

    # Four bilinear corners merged into ONE gather; modulator + validity are folded
    # into the corner weights (saves a full (N,H,W,9,C) multiply pass).
    ys = jnp.stack([y0, y0, y0 + 1, y0 + 1], axis=-1)             # (N,H,W,9,4)
    xs = jnp.stack([x0, x0 + 1, x0, x0 + 1], axis=-1)
    wts = jnp.stack([(1 - ly) * (1 - lx), (1 - ly) * lx,
                     ly * (1 - lx), ly * lx], axis=-1)            # (N,H,W,9,4)
    valid = ((ys >= 0) & (ys < h) & (xs >= 0) & (xs < w)).astype(jnp.float32)
    wts = wts * valid * modulator[..., None]

    lin = jnp.clip(ys, 0, h - 1) * w + jnp.clip(xs, 0, w - 1)     # (N,H,W,9,4)
    lin = lin.reshape(n, h * w * K * K * 4)
    xflat = x_nhwc.reshape(n, h * w, c)
    g = jax.vmap(lambda img, idx: img[idx])(xflat, lin)           # (N, HW*9*4, C)
    g = g.reshape(n, h, w, K * K, 4, c)
    cols = jnp.sum(g * wts[..., None], axis=4)                    # (N, H, W, 9, C)
    return cols.reshape(n * h * w, K * K * c)


# ------------------------------- forward pass ---------------------------------

def deformable_proj_embed_forward(x_nchw, params, *, block_m=None):
    n, cin, h, w = x_nchw.shape
    x = jnp.transpose(x_nchw, (0, 2, 3, 1)).astype(jnp.float32)   # NHWC
    m = n * h * w
    max_offset = min(h, w) // 4
    n_off, n_mod = 2 * K * K, K * K

    vmem_limit, auto_bm = _tpu_budget()
    if block_m is None:
        block_m = auto_bm

    # ---- stage 1: offset / modulator 3x3 conv (27 output channels) -----------
    # Per perf review: the 9x-expanded host im2col + Pallas matmul were pure HBM
    # waste for this tiny op; a plain XLA conv reads x once.
    w_cat = jnp.concatenate([params["w_off"], params["w_mod"]], axis=0)   # (27,Cin,3,3)
    b_cat = jnp.concatenate([params["b_off"], params["b_mod"]])
    offmod = lax.conv_general_dilated(
        x, jnp.transpose(w_cat, (2, 3, 1, 0)), (1, 1), ((PAD, PAD), (PAD, PAD)),
        dimension_numbers=("NHWC", "HWIO", "NHWC"),
        precision=lax.Precision.HIGHEST) + b_cat
    off = jnp.clip(offmod[..., :n_off], -max_offset, max_offset)
    off = off.reshape(n, h, w, K * K, 2)           # torchvision (dy, dx)-per-tap order
    mod = 2.0 * jax.nn.sigmoid(offmod[..., n_off:n_off + n_mod])

    # ---- stage 2: deformable bilinear sampling (XLA), mask folded in ----------
    cols = _bilinear_sample_cols(x, off, mod)                     # (M, 9*Cin) f32

    # ---- pad rows to the tile and the contraction dim to 128 lanes ------------
    tm = _choose_tm(m, block_m)
    m_pad = _round_up(m, tm)
    kd = K * K * cin
    kd_pad = _round_up(kd, LANES)
    cols = jnp.pad(cols, ((0, m_pad - m), (0, kd_pad - kd))).astype(jnp.bfloat16)

    emb = params["w_proj"].shape[0]
    o2 = _round_up(emb, LANES)
    w_proj = jnp.pad(_taps_to_mat(params["w_proj"]),
                     ((0, kd_pad - kd), (0, o2 - emb))).astype(jnp.bfloat16)
    b_proj = jnp.pad(params["b_proj"], (0, o2 - emb))[None, :]    # f32 (1, o2)

    # ---- kernel A: projection matmul + bias + per-tile BN partial stats -------
    y, stats = proj_matmul_stats(cols, w_proj, b_proj, tm=tm, vmem_limit=vmem_limit)

    # ---- finalize BatchNorm stats; remove padded rows' contribution -----------
    # Padded (zero) rows produce y == bias exactly -> subtract n_pad*b, n_pad*b^2.
    n_pad = m_pad - m
    bvec = b_proj[0]
    ssum = jnp.sum(stats[:, 0, :], axis=0) - n_pad * bvec
    ssq = jnp.sum(stats[:, 1, :], axis=0) - n_pad * bvec * bvec
    mean = ssum / m
    var = jnp.maximum(ssq / m - mean * mean, 0.0)                 # biased variance
    gamma = jnp.pad(params["bn_gamma"], (0, o2 - emb))[None, :]
    beta = jnp.pad(params["bn_beta"], (0, o2 - emb))[None, :]
    scale = gamma * lax.rsqrt(var[None, :] + BN_EPS)
    shift = beta - mean[None, :] * scale

    # ---- kernel B: BN affine + GELU, writes over y in place -------------------
    out = bn_gelu(y, scale, shift, tm=tm, vmem_limit=vmem_limit)  # bf16 (m_pad, o2)

    # Final slice + reshape + NHWC->NCHW + f32 upcast (single XLA copy fusion).
    out = out[:m, :emb].reshape(n, h, w, emb).astype(jnp.float32)
    return jnp.transpose(out, (0, 3, 1, 2))


# ----------------------------- reference (pure JAX) ---------------------------
# Valid because offset_conv / modulator_conv are zero-initialized in __init__:
# offsets == 0 and mask == 1, so deform_conv2d == plain 3x3 conv2d.

def reference_forward(x_nchw, params):
    y = lax.conv_general_dilated(
        x_nchw, params["w_proj"], (1, 1), ((PAD, PAD), (PAD, PAD)),
        dimension_numbers=("NCHW", "OIHW", "NCHW"),
        precision=lax.Precision.HIGHEST,
    ) + params["b_proj"][None, :, None, None]
    mean = jnp.mean(y, axis=(0, 2, 3), keepdims=True)
    var = jnp.mean(jnp.square(y - mean), axis=(0, 2, 3), keepdims=True)
    y = (y - mean) * lax.rsqrt(var + BN_EPS)
    y = y * params["bn_gamma"][None, :, None, None] + params["bn_beta"][None, :, None, None]
    return 0.5 * y * (1.0 + jax.scipy.special.erf(y / jnp.sqrt(2.0)))


# ----------------------------------- main -------------------------------------

if __name__ == "__main__":
    key = jax.random.PRNGKey(0)
    N, IN_CHANS, H, W = 2, 8, 16, 16
    EMB_CHANS = 16

    k_x, k_w, k_b = jax.random.split(key, 3)
    x = jax.random.normal(k_x, (N, IN_CHANS, H, W), jnp.float32)

    fan_in = IN_CHANS * K * K
    bound = 1.0 / math.sqrt(fan_in)   # PyTorch Conv2d default init range
    params = dict(
        w_proj=jax.random.uniform(k_w, (EMB_CHANS, IN_CHANS, K, K), jnp.float32, -bound, bound),
        b_proj=jax.random.uniform(k_b, (EMB_CHANS,), jnp.float32, -bound, bound),
        w_off=jnp.zeros((2 * K * K, IN_CHANS, K, K), jnp.float32),   # zero-init per __init__
        b_off=jnp.zeros((2 * K * K,), jnp.float32),
        w_mod=jnp.zeros((K * K, IN_CHANS, K, K), jnp.float32),       # zero-init per __init__
        b_mod=jnp.zeros((K * K,), jnp.float32),
        bn_gamma=jnp.ones((EMB_CHANS,), jnp.float32),
        bn_beta=jnp.zeros((EMB_CHANS,), jnp.float32),
    )

    out = jax.jit(deformable_proj_embed_forward)(x, params)
    out = jax.block_until_ready(out)
    assert out.shape == (N, EMB_CHANS, H, W), out.shape

    ref = reference_forward(x, params)
    max_err = float(jnp.max(jnp.abs(out - ref)))
    # bf16 matmul operands + bf16 y / bf16 GELU output + tanh-form GELU
    # => relaxed tolerance vs the f32 erf reference.
    assert max_err < 5e-2, f"max_err={max_err}"
    print("KERNEL_OK")
</pallas_src>

<mosaic_0001>
module attributes {stable_mosaic.version = 11 : i64} {
  func.func @_proj_stats_kernel(%arg0: i32, %arg1: memref<256x128xbf16, #tpu.memory_space<vmem>>, %arg2: memref<128x128xbf16, #tpu.memory_space<vmem>>, %arg3: memref<1x128xf32, #tpu.memory_space<vmem>>, %arg4: memref<256x128xbf16, #tpu.memory_space<vmem>>, %arg5: memref<1x2x128xf32, #tpu.memory_space<vmem>>) attributes {dimension_semantics = [#tpu.dimension_semantics<parallel>], iteration_bounds = array<i64: 2>, scalar_prefetch = 0 : i64, scratch_operands = 0 : i64, tpu.core_type = #tpu.core_type<tc>, window_params = [{transform_indices = @transform_0, window_bounds = array<i64: 256, 128>}, {pipeline_mode = #tpu.pipeline_mode<synchronous>, transform_indices = @transform_1, window_bounds = array<i64: 128, 128>}, {pipeline_mode = #tpu.pipeline_mode<synchronous>, transform_indices = @transform_2, window_bounds = array<i64: 1, 128>}, {transform_indices = @transform_3, window_bounds = array<i64: 256, 128>}, {transform_indices = @transform_4, window_bounds = array<i64: 1, 2, 128>}]} {
    %c0 = arith.constant 0 : index
    %c0_0 = arith.constant 0 : index
    %0 = vector.load %arg1[%c0, %c0_0] : memref<256x128xbf16, #tpu.memory_space<vmem>>, vector<256x128xbf16>
    %c0_1 = arith.constant 0 : index
    %c0_2 = arith.constant 0 : index
    %1 = vector.load %arg2[%c0_1, %c0_2] : memref<128x128xbf16, #tpu.memory_space<vmem>>, vector<128x128xbf16>
    %cst = arith.constant dense<0.000000e+00> : vector<256x128xf32>
    %2 = tpu.matmul %0, %1, %cst {dimension_numbers = #tpu.dot_dimension_numbers<[1], [0], [0], [1], [0, 0, 1, 1], [], []>} : vector<256x128xbf16>, vector<128x128xbf16>, vector<256x128xf32> -> vector<256x128xf32>
    %c0_3 = arith.constant 0 : index
    %c0_4 = arith.constant 0 : index
    %3 = vector.load %arg3[%c0_3, %c0_4] : memref<1x128xf32, #tpu.memory_space<vmem>>, vector<1x128xf32>
    %4 = vector.broadcast %3 : vector<1x128xf32> to vector<256x128xf32>
    %5 = arith.addf %2, %4 : vector<256x128xf32>
    %6 = arith.truncf %5 : vector<256x128xf32> to vector<256x128xbf16>
    %c0_5 = arith.constant 0 : index
    %c0_6 = arith.constant 0 : index
    %7 = vector.load %arg4[%c0_5, %c0_6] : memref<256x128xbf16, #tpu.memory_space<vmem>>, vector<256x128xbf16>
    tpu.vector_store %arg4[%c0_5, %c0_6], %6 {strides = array<i32>} : memref<256x128xbf16, #tpu.memory_space<vmem>>, vector<256x128xbf16>,
    %cst_7 = arith.constant dense<0.000000e+00> : vector<128xf32>
    %8 = vector.multi_reduction <add>, %5, %cst_7 [0] : vector<256x128xf32> to vector<128xf32>
    %9 = vector.shape_cast %8 : vector<128xf32> to vector<1x128xf32>
    %10 = arith.mulf %5, %5 : vector<256x128xf32>
    %cst_8 = arith.constant dense<0.000000e+00> : vector<128xf32>
    %11 = vector.multi_reduction <add>, %10, %cst_8 [0] : vector<256x128xf32> to vector<128xf32>
    %12 = vector.shape_cast %11 : vector<128xf32> to vector<1x128xf32>
    %13 = tpu.concatenate %9, %12 in 0 : vector<1x128xf32>, vector<1x128xf32> -> vector<2x128xf32>
    %14 = vector.shape_cast %13 : vector<2x128xf32> to vector<1x2x128xf32>
    %c0_9 = arith.constant 0 : index
    %c0_10 = arith.constant 0 : index
    %c0_11 = arith.constant 0 : index
    %15 = vector.load %arg5[%c0_9, %c0_10, %c0_11] : memref<1x2x128xf32, #tpu.memory_space<vmem>>, vector<1x2x128xf32>
    tpu.vector_store %arg5[%c0_9, %c0_10, %c0_11], %14 {strides = array<i32>} : memref<1x2x128xf32, #tpu.memory_space<vmem>>, vector<1x2x128xf32>,
    return
  }
  func.func @transform_0(%arg0: i32) -> (i32, i32) {
    %c0_i32 = arith.constant 0 : i32
    %c0_i32_0 = arith.constant 0 : i32
    return %arg0, %c0_i32 : i32, i32
  }
  func.func @transform_1(%arg0: i32) -> (i32, i32) {
    %c0_i32 = arith.constant 0 : i32
    %c0_i32_0 = arith.constant 0 : i32
    %c0_i32_1 = arith.constant 0 : i32
    return %c0_i32, %c0_i32_0 : i32, i32
  }
  func.func @transform_2(%arg0: i32) -> (i32, i32) {
    %c0_i32 = arith.constant 0 : i32
    %c0_i32_0 = arith.constant 0 : i32
    %c0_i32_1 = arith.constant 0 : i32
    return %c0_i32, %c0_i32_0 : i32, i32
  }
  func.func @transform_3(%arg0: i32) -> (i32, i32) {
    %c0_i32 = arith.constant 0 : i32
    %c0_i32_0 = arith.constant 0 : i32
    return %arg0, %c0_i32 : i32, i32
  }
  func.func @transform_4(%arg0: i32) -> (i32, i32, i32) {
    %c0_i32 = arith.constant 0 : i32
    %c0_i32_0 = arith.constant 0 : i32
    %c0_i32_1 = arith.constant 0 : i32
    return %arg0, %c0_i32, %c0_i32_0 : i32, i32, i32
  }
}

module attributes {stable_mosaic.version = 11 : i64} {
  func.func @_bn_gelu_kernel(%arg0: i32, %arg1: memref<256x128xbf16, #tpu.memory_space<vmem>>, %arg2: memref<1x128xf32, #tpu.memory_space<vmem>>, %arg3: memref<1x128xf32, #tpu.memory_space<vmem>>, %arg4: memref<256x128xbf16, #tpu.memory_space<vmem>>) attributes {dimension_semantics = [#tpu.dimension_semantics<parallel>], iteration_bounds = array<i64: 2>, scalar_prefetch = 0 : i64, scratch_operands = 0 : i64, tpu.core_type = #tpu.core_type<tc>, window_params = [{transform_indices = @transform_0, window_bounds = array<i64: 256, 128>}, {pipeline_mode = #tpu.pipeline_mode<synchronous>, transform_indices = @transform_1, window_bounds = array<i64: 1, 128>}, {pipeline_mode = #tpu.pipeline_mode<synchronous>, transform_indices = @transform_2, window_bounds = array<i64: 1, 128>}, {transform_indices = @transform_3, window_bounds = array<i64: 256, 128>}]} {
    %c0 = arith.constant 0 : index
    %c0_0 = arith.constant 0 : index
    %0 = vector.load %arg1[%c0, %c0_0] : memref<256x128xbf16, #tpu.memory_space<vmem>>, vector<256x128xbf16>
    %1 = arith.extf %0 : vector<256x128xbf16> to vector<256x128xf32>
    %c0_1 = arith.constant 0 : index
    %c0_2 = arith.constant 0 : index
    %2 = vector.load %arg2[%c0_1, %c0_2] : memref<1x128xf32, #tpu.memory_space<vmem>>, vector<1x128xf32>
    %3 = vector.broadcast %2 : vector<1x128xf32> to vector<256x128xf32>
    %4 = arith.mulf %1, %3 : vector<256x128xf32>
    %c0_3 = arith.constant 0 : index
    %c0_4 = arith.constant 0 : index
    %5 = vector.load %arg3[%c0_3, %c0_4] : memref<1x128xf32, #tpu.memory_space<vmem>>, vector<1x128xf32>
    %6 = vector.broadcast %5 : vector<1x128xf32> to vector<256x128xf32>
    %7 = arith.addf %4, %6 : vector<256x128xf32>
    %cst = arith.constant 5.000000e-01 : f32
    %8 = vector.broadcast %cst : f32 to vector<256x128xf32>
    %9 = arith.mulf %8, %7 : vector<256x128xf32>
    %cst_5 = arith.constant 4.471500e-02 : f32
    %10 = vector.broadcast %cst_5 : f32 to vector<256x128xf32>
    %11 = arith.mulf %10, %7 : vector<256x128xf32>
    %12 = arith.mulf %11, %7 : vector<256x128xf32>
    %13 = arith.mulf %12, %7 : vector<256x128xf32>
    %14 = arith.addf %7, %13 : vector<256x128xf32>
    %cst_6 = arith.constant 0.797884583 : f32
    %15 = vector.broadcast %cst_6 : f32 to vector<256x128xf32>
    %16 = arith.mulf %15, %14 : vector<256x128xf32>
    %17 = math.tanh %16 : vector<256x128xf32>
    %cst_7 = arith.constant 1.000000e+00 : f32
    %18 = vector.broadcast %cst_7 : f32 to vector<256x128xf32>
    %19 = arith.addf %18, %17 : vector<256x128xf32>
    %20 = arith.mulf %9, %19 : vector<256x128xf32>
    %21 = arith.truncf %20 : vector<256x128xf32> to vector<256x128xbf16>
    %c0_8 = arith.constant 0 : index
    %c0_9 = arith.constant 0 : index
    %22 = vector.load %arg4[%c0_8, %c0_9] : memref<256x128xbf16, #tpu.memory_space<vmem>>, vector<256x128xbf16>
    tpu.vector_store %arg4[%c0_8, %c0_9], %21 {strides = array<i32>} : memref<256x128xbf16, #tpu.memory_space<vmem>>, vector<256x128xbf16>,
    return
  }
  func.func @transform_0(%arg0: i32) -> (i32, i32) {
    %c0_i32 = arith.constant 0 : i32
    %c0_i32_0 = arith.constant 0 : i32
    return %arg0, %c0_i32 : i32, i32
  }
  func.func @transform_1(%arg0: i32) -> (i32, i32) {
    %c0_i32 = arith.constant 0 : i32
    %c0_i32_0 = arith.constant 0 : i32
    %c0_i32_1 = arith.constant 0 : i32
    return %c0_i32, %c0_i32_0 : i32, i32
  }
  func.func @transform_2(%arg0: i32) -> (i32, i32) {
    %c0_i32 = arith.constant 0 : i32
    %c0_i32_0 = arith.constant 0 : i32
    %c0_i32_1 = arith.constant 0 : i32
    return %c0_i32, %c0_i32_0 : i32, i32
  }
  func.func @transform_3(%arg0: i32) -> (i32, i32) {
    %c0_i32 = arith.constant 0 : i32
    %c0_i32_0 = arith.constant 0 : i32
    return %arg0, %c0_i32 : i32, i32
  }
}

</mosaic_0001>

<llo_original>
// kernel: deformable_proj_embed_forward.3
$region0: #{deformable_proj_embed_forward.3}
  #allocation0 [shape = 'u32[]', space=smem, size = 0x4, offset = 0x4, fixed_abs, tag = 'smem constant byte address 0x4 - core index']
  #allocation1 [shape = 'u32[144,128]{1,0:T(1,128)}', space=vmem, size = 0x12000, scoped, tag = 'internal scratch']
  %s0 = inlined_call_operand.vmem [shape: bf16[512,128], index: 0, kind: input, shape index: {}, may-alias: {0,3}]
  %s1 = inlined_call_operand.vmem [shape: f32[1,128], index: 1, kind: input, shape index: {}]
  %s2 = inlined_call_operand.vmem [shape: f32[1,128], index: 2, kind: input, shape index: {}]
  %s3 = inlined_call_operand.vmem [shape: bf16[512,128], index: 3, kind: output, shape index: {}, may-alias: {0,3}]
  %s4 = sld [smem:[#allocation0]]
  $region45: #{deformable_proj_embed_forward.3} parent=0
    _
  %s6 = ssub.s32 1, %s4
  %s7 = scalar_select 0, %s6, %s4
  loop: start=0, step=1, limit=4
  $region2: #{deformable_proj_embed_forward.3} parent=0 // loop_pre_header
    _
  $region3: #{deformable_proj_embed_forward.3} parent=0 // loop_header
    %s9 = sphi 0, %s13
    %p10 = scmp.ge.s32.totalorder %s9, 4
    %s19 = sphi 0, %s21
    %s22 = sphi 0, %s19
    %s23 = sphi 0, %s22
    %s39 = sphi 0, %s23
    %s43 = sphi 0, %s43
    %s45 = sphi 0, %s43
    %s46 = sphi 0, %s45
    %s60 = sphi 0, %s46
    %s64 = sphi 0, %s64
    %s66 = sphi 0, %s64
    %s67 = sphi 0, %s66
    %s81 = sphi 0, %s67
    %s87 = sphi 0, %s89
    %s90 = sphi 0, %s87
    %s91 = sphi 0, %s90
    %s107 = sphi 0, %s91
  $region4: #{deformable_proj_embed_forward.3} parent=0 // loop_header_branch
    %12 = sbr.rel (%p10) target = $region8
  $region5: #{deformable_proj_embed_forward.3} parent=0 // loop_body
    %s14 = ssub.s32 %s9, 1
    %s15 = ssub.s32 %s9, 2
    %s16 = sadd.s32 %s9, 1
    %s17 = ssub.s32 %s9, %s16
    %p18 = scmp.eq.s32.totalorder %s17, 0
    %s20 = sadd.s32 %s19, 1
    %s21 = scalar_select %p18, %s19, %s20
    %p24 = pneg %p18
    %p25 = scmp.eq.s32.totalorder %s9, 1
    %p26 = por %p24, %p25
    %p27 = scmp.ne.s32.totalorder %s19, %s22
    %p28 = scmp.eq.s32.totalorder %s9, 0
    %p29 = por %p27, %p28
    %p30 = scmp.ne.s32.totalorder %s19, %s22
    %p31 = scmp.eq.s32.totalorder %s14, 1
    %p32 = por %p30, %p31
    %p33 = scmp.ne.s32.totalorder %s22, %s23
    %p34 = scmp.eq.s32.totalorder %s14, 0
    %p35 = por %p33, %p34
    %p36 = scmp.ne.s32.totalorder %s22, %s23
    %p37 = scmp.eq.s32.totalorder %s15, 1
    %p38 = por %p36, %p37
    %p40 = scmp.ne.s32.totalorder %s23, %s39
    %p41 = scmp.eq.s32.totalorder %s15, 0
    %p42 = por %p40, %p41
    %s44 = sadd.s32 %s43, 1
    %p47 = scmp.eq.s32.totalorder %s9, 1
    %p48 = scmp.ne.s32.totalorder %s43, %s45
    %p49 = scmp.eq.s32.totalorder %s9, 0
    %p50 = por %p48, %p49
    %p51 = scmp.ne.s32.totalorder %s43, %s45
    %p52 = scmp.eq.s32.totalorder %s14, 1
    %p53 = por %p51, %p52
    %p54 = scmp.ne.s32.totalorder %s45, %s46
    %p55 = scmp.eq.s32.totalorder %s14, 0
    %p56 = por %p54, %p55
    %p57 = scmp.ne.s32.totalorder %s45, %s46
    %p58 = scmp.eq.s32.totalorder %s15, 1
    %p59 = por %p57, %p58
    %p61 = scmp.ne.s32.totalorder %s46, %s60
    %p62 = scmp.eq.s32.totalorder %s15, 0
    %p63 = por %p61, %p62
    %s65 = sadd.s32 %s64, 1
    %p68 = scmp.eq.s32.totalorder %s9, 1
    %p69 = scmp.ne.s32.totalorder %s64, %s66
    %p70 = scmp.eq.s32.totalorder %s9, 0
    %p71 = por %p69, %p70
    %p72 = scmp.ne.s32.totalorder %s64, %s66
    %p73 = scmp.eq.s32.totalorder %s14, 1
    %p74 = por %p72, %p73
    %p75 = scmp.ne.s32.totalorder %s66, %s67
    %p76 = scmp.eq.s32.totalorder %s14, 0
    %p77 = por %p75, %p76
    %p78 = scmp.ne.s32.totalorder %s66, %s67
    %p79 = scmp.eq.s32.totalorder %s15, 1
    %p80 = por %p78, %p79
    %p82 = scmp.ne.s32.totalorder %s67, %s81
    %p83 = scmp.eq.s32.totalorder %s15, 0
    %p84 = por %p82, %p83
    %s85 = ssub.s32 %s9, %s16
    %p86 = scmp.eq.s32.totalorder %s85, 0
    %s88 = sadd.s32 %s87, 1
    %s89 = scalar_select %p86, %s87, %s88
    %p92 = pneg %p86
    %p93 = scmp.eq.s32.totalorder %s9, 1
    %p94 = por %p92, %p93
    %p95 = scmp.ne.s32.totalorder %s87, %s90
    %p96 = scmp.eq.s32.totalorder %s9, 0
    %p97 = por %p95, %p96
    %p98 = scmp.ne.s32.totalorder %s87, %s90
    %p99 = scmp.eq.s32.totalorder %s14, 1
    %p100 = por %p98, %p99
    %p101 = scmp.ne.s32.totalorder %s90, %s91
    %p102 = scmp.eq.s32.totalorder %s14, 0
    %p103 = por %p101, %p102
    %p104 = scmp.ne.s32.totalorder %s90, %s91
    %p105 = scmp.eq.s32.totalorder %s15, 1
    %p106 = por %p104, %p105
    %p108 = scmp.ne.s32.totalorder %s91, %s107
    %p109 = scmp.eq.s32.totalorder %s15, 0
    %p110 = por %p108, %p109
    %p111 = scmp.le.s32.totalorder 1, %s9
    %p112 = scmp.lt.s32.totalorder %s9, 3
    %p113 = pnand %p111, %p112
    %p114 = pneg %p113
    // Predicated region
    $region9: #{deformable_proj_embed_forward.3} parent=5 // pred_check
      _
    $region10: #{deformable_proj_embed_forward.3} parent=5 // pred_check_branch
      %116 = sbr.rel (%p113) target = $region12
    $region11: #{deformable_proj_embed_forward.3} parent=5 // pred_region
      %s117 = ssub.s32 %s9, 1
      // Predicated region
      $region13: #{deformable_proj_embed_forward.3} parent=11 // pred_check
        %p118 = pneg %p56
      $region14: #{deformable_proj_embed_forward.3} parent=11 // pred_check_branch
        %120 = sbr.rel (%p118) target = $region16
      $region15: #{deformable_proj_embed_forward.3} parent=11 // pred_region
        _
      $region16: #{deformable_proj_embed_forward.3} parent=11 // pred_fallthru
        _
      // Predicated region
      $region17: #{deformable_proj_embed_forward.3} parent=11 // pred_check
        %p121 = pneg %p77
      $region18: #{deformable_proj_embed_forward.3} parent=11 // pred_check_branch
        %123 = sbr.rel (%p121) target = $region20
      $region19: #{deformable_proj_embed_forward.3} parent=11 // pred_region
        _
      $region20: #{deformable_proj_embed_forward.3} parent=11 // pred_fallthru
        _
    $region12: #{deformable_proj_embed_forward.3} parent=5 // pred_fallthru
      _
    %p124 = scmp.lt.s32.totalorder %s9, 2
    // Predicated region
    $region21: #{deformable_proj_embed_forward.3} parent=5 // pred_check
      %p125 = pneg %p124
    $region22: #{deformable_proj_embed_forward.3} parent=5 // pred_check_branch
      %127 = sbr.rel (%p125) target = $region24
    $region23: #{deformable_proj_embed_forward.3} parent=5 // pred_region
      // Predicated region
      $region25: #{deformable_proj_embed_forward.3} parent=23 // pred_check
        %p128 = pneg %p29
      $region26: #{deformable_proj_embed_forward.3} parent=23 // pred_check_branch
        %130 = sbr.rel (%p128) target = $region28
      $region27: #{deformable_proj_embed_forward.3} parent=23 // pred_region
        %s131 = smul.u32 32, %s9
        %p132 = scmp.lt.s32.totalorder %s131, 63
        %s133 = scalar_select %p132, %s131, 63
        %s134 = smul.addr %s133, 4
        %s135 = scalar_lea.vmem %s0, %s134
        %s136 = smul.u32 32, %s9
      $region28: #{deformable_proj_embed_forward.3} parent=23 // pred_fallthru
        _
    $region24: #{deformable_proj_embed_forward.3} parent=5 // pred_fallthru
      _
    %p137 = scmp.le.s32.totalorder 1, %s9
    %p138 = scmp.lt.s32.totalorder %s9, 3
    %p139 = pnand %p137, %p138
    %p140 = pneg %p139
    // Predicated region
    $region29: #{deformable_proj_embed_forward.3} parent=5 // pred_check
      _
    $region30: #{deformable_proj_embed_forward.3} parent=5 // pred_check_branch
      %142 = sbr.rel (%p139) target = $region32
    $region31: #{deformable_proj_embed_forward.3} parent=5 // pred_region
      %s143 = ssub.s32 %s9, 1
      %s144 = smul.u32 32, %s14
      %p145 = scmp.lt.s32.totalorder %s144, 63
      %s146 = scalar_select %p145, %s144, 63
      %s147 = smul.addr %s146, 4
      %s148 = scalar_lea.vmem %s0, %s147
      %p149 = pneg %p35
      %p150 = pneg %p32
      %p151 = pneg %p56
      %p152 = pneg %p53
      %p153 = pneg %p77
      %p154 = pneg %p74
      %p155 = pneg %p103
      %p156 = pneg %p100
      %s157 = smul.u32 32, %s14
      %p158 = scmp.lt.s32.totalorder %s157, 63
      %s159 = scalar_select %p158, %s157, 63
      %s160 = smul.addr %s159, 4
      %s161 = scalar_lea.vmem %s3, %s160
      %s162 = smul.u32 32, %s14
      %p163 = scmp.lt.s32.totalorder %s162, 63
      %s164 = scalar_select %p163, %s162, 63
      %s165 = smul.addr %s164, 4
      %s166 = scalar_lea.vmem %s0, %s165
      %s167 = smul.u32 32, %s14
      %s168 = smul.u32 32, %s14
      %p169 = scmp.lt.s32.totalorder %s168, 63
      %s170 = scalar_select %p169, %s168, 63
      %s171 = smul.addr %s170, 4
      %s172 = scalar_lea.vmem %s3, %s171
      %s173 = smul.u32 32, %s14
      %v174 = vld [vmem:[%s166] sm:$0xf]
      %v175 = vld [vmem:[%s166 + $0x4] sm:$0xf]
      %v176 = vld [vmem:[%s166 + $0x8] sm:$0xf]
      %v177 = vld [vmem:[%s166 + $0xc] sm:$0xf]
      %v178 = vld [vmem:[%s166 + $0x10] sm:$0xf]
      %v179 = vld [vmem:[%s166 + $0x14] sm:$0xf]
      %v180 = vld [vmem:[%s166 + $0x18] sm:$0xf]
      %v181 = vld [vmem:[%s166 + $0x1c] sm:$0xf]
      %v182 = vld [vmem:[%s166 + $0x20] sm:$0xf]
      %v183 = vld [vmem:[%s166 + $0x24] sm:$0xf]
      %v184 = vld [vmem:[%s166 + $0x28] sm:$0xf]
      %v185 = vld [vmem:[%s166 + $0x2c] sm:$0xf]
      %v186 = vld [vmem:[%s166 + $0x30] sm:$0xf]
      %v187 = vld [vmem:[%s166 + $0x34] sm:$0xf]
      %v188 = vld [vmem:[%s166 + $0x38] sm:$0xf]
      %v189 = vld [vmem:[%s166 + $0x3c] sm:$0xf]
      %v190 = vld [vmem:[%s166 + $0x40] sm:$0xf]
      %v191 = vld [vmem:[%s166 + $0x44] sm:$0xf]
      %v192 = vld [vmem:[%s166 + $0x48] sm:$0xf]
      %v193 = vld [vmem:[%s166 + $0x4c] sm:$0xf]
      %v194 = vld [vmem:[%s166 + $0x50] sm:$0xf]
      %v195 = vld [vmem:[%s166 + $0x54] sm:$0xf]
      %v196 = vld [vmem:[%s166 + $0x58] sm:$0xf]
      %v197 = vld [vmem:[%s166 + $0x5c] sm:$0xf]
      %v198 = vld [vmem:[%s166 + $0x60] sm:$0xf]
      %v199 = vld [vmem:[%s166 + $0x64] sm:$0xf]
      %v200 = vld [vmem:[%s166 + $0x68] sm:$0xf]
      %v201 = vld [vmem:[%s166 + $0x6c] sm:$0xf]
      %v202 = vld [vmem:[%s166 + $0x70] sm:$0xf]
      %v203 = vld [vmem:[%s166 + $0x74] sm:$0xf]
      %v204 = vld [vmem:[%s166 + $0x78] sm:$0xf]
      %v205 = vld [vmem:[%s166 + $0x7c] sm:$0xf]
      %v206 = vunpack.c.l.bf16 %v174
      %v207 = vunpack.c.l.bf16 %v175
      %v208 = vunpack.c.l.bf16 %v176
      %v209 = vunpack.c.l.bf16 %v177
      %v210 = vunpack.c.l.bf16 %v178
      %v211 = vunpack.c.l.bf16 %v179
      %v212 = vunpack.c.l.bf16 %v180
      %v213 = vunpack.c.l.bf16 %v181
      %v214 = vunpack.c.l.bf16 %v182
      %v215 = vunpack.c.l.bf16 %v183
      %v216 = vunpack.c.l.bf16 %v184
      %v217 = vunpack.c.l.bf16 %v185
      %v218 = vunpack.c.l.bf16 %v186
      %v219 = vunpack.c.l.bf16 %v187
      %v220 = vunpack.c.l.bf16 %v188
      %v221 = vunpack.c.l.bf16 %v189
      %v222 = vunpack.c.l.bf16 %v190
      %v223 = vunpack.c.l.bf16 %v191
      %v224 = vunpack.c.l.bf16 %v192
      %v225 = vunpack.c.l.bf16 %v193
      %v226 = vunpack.c.l.bf16 %v194
      %v227 = vunpack.c.l.bf16 %v195
      %v228 = vunpack.c.l.bf16 %v196
      %v229 = vunpack.c.l.bf16 %v197
      %v230 = vunpack.c.l.bf16 %v198
      %v231 = vunpack.c.l.bf16 %v199
      %v232 = vunpack.c.l.bf16 %v200
      %v233 = vunpack.c.l.bf16 %v201
      %v234 = vunpack.c.l.bf16 %v202
      %v235 = vunpack.c.l.bf16 %v203
      %v236 = vunpack.c.l.bf16 %v204
      %v237 = vunpack.c.l.bf16 %v205
      %v238 = vld [vmem:[%s1] sm:$0x1]
      %v240 = vlaneseq
      %v241 = vshrl.u32 %v240, 7
      %v242 = vsub.s32 0, %v241
      %v243 = vrot.slane %v238, %v242
      %v245 = vmul.f32 %v206, %v243
      %v246 = vmul.f32 %v207, %v243
      %v247 = vmul.f32 %v208, %v243
      %v248 = vmul.f32 %v209, %v243
      %v249 = vmul.f32 %v210, %v243
      %v250 = vmul.f32 %v211, %v243
      %v251 = vmul.f32 %v212, %v243
      %v252 = vmul.f32 %v213, %v243
      %v253 = vmul.f32 %v214, %v243
      %v254 = vmul.f32 %v215, %v243
      %v255 = vmul.f32 %v216, %v243
      %v256 = vmul.f32 %v217, %v243
      %v257 = vmul.f32 %v218, %v243
      %v258 = vmul.f32 %v219, %v243
      %v259 = vmul.f32 %v220, %v243
      %v260 = vmul.f32 %v221, %v243
      %v261 = vmul.f32 %v222, %v243
      %v262 = vmul.f32 %v223, %v243
      %v263 = vmul.f32 %v224, %v243
      %v264 = vmul.f32 %v225, %v243
      %v265 = vmul.f32 %v226, %v243
      %v266 = vmul.f32 %v227, %v243
      %v267 = vmul.f32 %v228, %v243
      %v268 = vmul.f32 %v229, %v243
      %v269 = vmul.f32 %v230, %v243
      %v270 = vmul.f32 %v231, %v243
      %v271 = vmul.f32 %v232, %v243
      %v272 = vmul.f32 %v233, %v243
      %v273 = vmul.f32 %v234, %v243
      %v274 = vmul.f32 %v235, %v243
      %v275 = vmul.f32 %v236, %v243
      %v276 = vmul.f32 %v237, %v243
      %v277 = vld [vmem:[%s2] sm:$0x1]
      %v279 = vlaneseq
      %v280 = vshrl.u32 %v279, 7
      %v281 = vsub.s32 0, %v280
      %v282 = vrot.slane %v277, %v281
      %v284 = vadd.f32 %v245, %v282
      %v285 = vadd.f32 %v246, %v282
      %v286 = vadd.f32 %v247, %v282
      %v287 = vadd.f32 %v248, %v282
      %v288 = vadd.f32 %v249, %v282
      %v289 = vadd.f32 %v250, %v282
      %v290 = vadd.f32 %v251, %v282
      %v291 = vadd.f32 %v252, %v282
      %v292 = vadd.f32 %v253, %v282
      %v293 = vadd.f32 %v254, %v282
      %v294 = vadd.f32 %v255, %v282
      %v295 = vadd.f32 %v256, %v282
      %v296 = vadd.f32 %v257, %v282
      %v297 = vadd.f32 %v258, %v282
      %v298 = vadd.f32 %v259, %v282
      %v299 = vadd.f32 %v260, %v282
      %v300 = vadd.f32 %v261, %v282
      %v301 = vadd.f32 %v262, %v282
      %v302 = vadd.f32 %v263, %v282
      %v303 = vadd.f32 %v264, %v282
      %v304 = vadd.f32 %v265, %v282
      %v305 = vadd.f32 %v266, %v282
      %v306 = vadd.f32 %v267, %v282
      %v307 = vadd.f32 %v268, %v282
      %v308 = vadd.f32 %v269, %v282
      %v309 = vadd.f32 %v270, %v282
      %v310 = vadd.f32 %v271, %v282
      %v311 = vadd.f32 %v272, %v282
      %v312 = vadd.f32 %v273, %v282
      %v313 = vadd.f32 %v274, %v282
      %v314 = vadd.f32 %v275, %v282
      %v315 = vadd.f32 %v276, %v282
      %v316 = vmul.f32 %v284, 0.5
      %v317 = vmul.f32 %v285, 0.5
      %v318 = vmul.f32 %v286, 0.5
      %v319 = vmul.f32 %v287, 0.5
      %v320 = vmul.f32 %v288, 0.5
      %v321 = vmul.f32 %v289, 0.5
      %v322 = vmul.f32 %v290, 0.5
      %v323 = vmul.f32 %v291, 0.5
      %v324 = vmul.f32 %v292, 0.5
      %v325 = vmul.f32 %v293, 0.5
      %v326 = vmul.f32 %v294, 0.5
      %v327 = vmul.f32 %v295, 0.5
      %v328 = vmul.f32 %v296, 0.5
      %v329 = vmul.f32 %v297, 0.5
      %v330 = vmul.f32 %v298, 0.5
      %v331 = vmul.f32 %v299, 0.5
      %v332 = vmul.f32 %v300, 0.5
      %v333 = vmul.f32 %v301, 0.5
      %v334 = vmul.f32 %v302, 0.5
      %v335 = vmul.f32 %v303, 0.5
      %v336 = vmul.f32 %v304, 0.5
      %v337 = vmul.f32 %v305, 0.5
      %v338 = vmul.f32 %v306, 0.5
      %v339 = vmul.f32 %v307, 0.5
      %v340 = vmul.f32 %v308, 0.5
      %v341 = vmul.f32 %v309, 0.5
      %v342 = vmul.f32 %v310, 0.5
      %v343 = vmul.f32 %v311, 0.5
      %v344 = vmul.f32 %v312, 0.5
      %v345 = vmul.f32 %v313, 0.5
      %v346 = vmul.f32 %v314, 0.5
      %v347 = vmul.f32 %v315, 0.5
      %v348 = vmul.f32 %v284, 0.044715
      %v349 = vmul.f32 %v285, 0.044715
      %v350 = vmul.f32 %v286, 0.044715
      %v351 = vmul.f32 %v287, 0.044715
      %v352 = vmul.f32 %v288, 0.044715
      %v353 = vmul.f32 %v289, 0.044715
      %v354 = vmul.f32 %v290, 0.044715
      %v355 = vmul.f32 %v291, 0.044715
      %v356 = vmul.f32 %v292, 0.044715
      %v357 = vmul.f32 %v293, 0.044715
      %v358 = vmul.f32 %v294, 0.044715
      %v359 = vmul.f32 %v295, 0.044715
      %v360 = vmul.f32 %v296, 0.044715
      %v361 = vmul.f32 %v297, 0.044715
      %v362 = vmul.f32 %v298, 0.044715
      %v363 = vmul.f32 %v299, 0.044715
      %v364 = vmul.f32 %v300, 0.044715
      %v365 = vmul.f32 %v301, 0.044715
      %v366 = vmul.f32 %v302, 0.044715
      %v367 = vmul.f32 %v303, 0.044715
      %v368 = vmul.f32 %v304, 0.044715
      %v369 = vmul.f32 %v305, 0.044715
      %v370 = vmul.f32 %v306, 0.044715
      %v371 = vmul.f32 %v307, 0.044715
      %v372 = vmul.f32 %v308, 0.044715
      %v373 = vmul.f32 %v309, 0.044715
      %v374 = vmul.f32 %v310, 0.044715
      %v375 = vmul.f32 %v311, 0.044715
      %v376 = vmul.f32 %v312, 0.044715
      %v377 = vmul.f32 %v313, 0.044715
      %v378 = vmul.f32 %v314, 0.044715
      %v379 = vmul.f32 %v315, 0.044715
      %v380 = vmul.f32 %v348, %v284
      %v381 = vmul.f32 %v349, %v285
      %v382 = vmul.f32 %v350, %v286
      %v383 = vmul.f32 %v351, %v287
      %v384 = vmul.f32 %v352, %v288
      %v385 = vmul.f32 %v353, %v289
      %v386 = vmul.f32 %v354, %v290
      %v387 = vmul.f32 %v355, %v291
      %v388 = vmul.f32 %v356, %v292
      %v389 = vmul.f32 %v357, %v293
      %v390 = vmul.f32 %v358, %v294
      %v391 = vmul.f32 %v359, %v295
      %v392 = vmul.f32 %v360, %v296
      %v393 = vmul.f32 %v361, %v297
      %v394 = vmul.f32 %v362, %v298
      %v395 = vmul.f32 %v363, %v299
      %v396 = vmul.f32 %v364, %v300
      %v397 = vmul.f32 %v365, %v301
      %v398 = vmul.f32 %v366, %v302
      %v399 = vmul.f32 %v367, %v303
      %v400 = vmul.f32 %v368, %v304
      %v401 = vmul.f32 %v369, %v305
      %v402 = vmul.f32 %v370, %v306
      %v403 = vmul.f32 %v371, %v307
      %v404 = vmul.f32 %v372, %v308
      %v405 = vmul.f32 %v373, %v309
      %v406 = vmul.f32 %v374, %v310
      %v407 = vmul.f32 %v375, %v311
      %v408 = vmul.f32 %v376, %v312
      %v409 = vmul.f32 %v377, %v313
      %v410 = vmul.f32 %v378, %v314
      %v411 = vmul.f32 %v379, %v315
      %v412 = vmul.f32 %v380, %v284
      %v413 = vmul.f32 %v381, %v285
      %v414 = vmul.f32 %v382, %v286
      %v415 = vmul.f32 %v383, %v287
      %v416 = vmul.f32 %v384, %v288
      %v417 = vmul.f32 %v385, %v289
      %v418 = vmul.f32 %v386, %v290
      %v419 = vmul.f32 %v387, %v291
      %v420 = vmul.f32 %v388, %v292
      %v421 = vmul.f32 %v389, %v293
      %v422 = vmul.f32 %v390, %v294
      %v423 = vmul.f32 %v391, %v295
      %v424 = vmul.f32 %v392, %v296
      %v425 = vmul.f32 %v393, %v297
      %v426 = vmul.f32 %v394, %v298
      %v427 = vmul.f32 %v395, %v299
      %v428 = vmul.f32 %v396, %v300
      %v429 = vmul.f32 %v397, %v301
      %v430 = vmul.f32 %v398, %v302
      %v431 = vmul.f32 %v399, %v303
      %v432 = vmul.f32 %v400, %v304
      %v433 = vmul.f32 %v401, %v305
      %v434 = vmul.f32 %v402, %v306
      %v435 = vmul.f32 %v403, %v307
      %v436 = vmul.f32 %v404, %v308
      %v437 = vmul.f32 %v405, %v309
      %v438 = vmul.f32 %v406, %v310
      %v439 = vmul.f32 %v407, %v311
      %v440 = vmul.f32 %v408, %v312
      %v441 = vmul.f32 %v409, %v313
      %v442 = vmul.f32 %v410, %v314
      %v443 = vmul.f32 %v411, %v315
      %v444 = vadd.f32 %v284, %v412
      %v445 = vadd.f32 %v285, %v413
      %v446 = vadd.f32 %v286, %v414
      %v447 = vadd.f32 %v287, %v415
      %v448 = vadd.f32 %v288, %v416
      %v449 = vadd.f32 %v289, %v417
      %v450 = vadd.f32 %v290, %v418
      %v451 = vadd.f32 %v291, %v419
      %v452 = vadd.f32 %v292, %v420
      %v453 = vadd.f32 %v293, %v421
      %v454 = vadd.f32 %v294, %v422
      %v455 = vadd.f32 %v295, %v423
      %v456 = vadd.f32 %v296, %v424
      %v457 = vadd.f32 %v297, %v425
      %v458 = vadd.f32 %v298, %v426
      %v459 = vadd.f32 %v299, %v427
      %v460 = vadd.f32 %v300, %v428
      %v461 = vadd.f32 %v301, %v429
      %v462 = vadd.f32 %v302, %v430
      %v463 = vadd.f32 %v303, %v431
      %v464 = vadd.f32 %v304, %v432
      %v465 = vadd.f32 %v305, %v433
      %v466 = vadd.f32 %v306, %v434
      %v467 = vadd.f32 %v307, %v435
      %v468 = vadd.f32 %v308, %v436
      %v469 = vadd.f32 %v309, %v437
      %v470 = vadd.f32 %v310, %v438
      %v471 = vadd.f32 %v311, %v439
      %v472 = vadd.f32 %v312, %v440
      %v473 = vadd.f32 %v313, %v441
      %v474 = vadd.f32 %v314, %v442
      %v475 = vadd.f32 %v315, %v443
      %v476 = vmul.f32 %v444, 0.7978846
      %v477 = vmul.f32 %v445, 0.7978846
      %v478 = vmul.f32 %v446, 0.7978846
      %v479 = vmul.f32 %v447, 0.7978846
      %v480 = vmul.f32 %v448, 0.7978846
      %v481 = vmul.f32 %v449, 0.7978846
      %v482 = vmul.f32 %v450, 0.7978846
      %v483 = vmul.f32 %v451, 0.7978846
      %v484 = vmul.f32 %v452, 0.7978846
      %v485 = vmul.f32 %v453, 0.7978846
      %v486 = vmul.f32 %v454, 0.7978846
      %v487 = vmul.f32 %v455, 0.7978846
      %v488 = vmul.f32 %v456, 0.7978846
      %v489 = vmul.f32 %v457, 0.7978846
      %v490 = vmul.f32 %v458, 0.7978846
      %v491 = vmul.f32 %v459, 0.7978846
      %v492 = vmul.f32 %v460, 0.7978846
      %v493 = vmul.f32 %v461, 0.7978846
      %v494 = vmul.f32 %v462, 0.7978846
      %v495 = vmul.f32 %v463, 0.7978846
      %v496 = vmul.f32 %v464, 0.7978846
      %v497 = vmul.f32 %v465, 0.7978846
      %v498 = vmul.f32 %v466, 0.7978846
      %v499 = vmul.f32 %v467, 0.7978846
      %v500 = vmul.f32 %v468, 0.7978846
      %v501 = vmul.f32 %v469, 0.7978846
      %v502 = vmul.f32 %v470, 0.7978846
      %v503 = vmul.f32 %v471, 0.7978846
      %v504 = vmul.f32 %v472, 0.7978846
      %v505 = vmul.f32 %v473, 0.7978846
      %v506 = vmul.f32 %v474, 0.7978846
      %v507 = vmul.f32 %v475, 0.7978846
      %v508 = vtanh.pop %v476
      %v509 = vtanh.pop %v477
      %v510 = vtanh.pop %v478
      %v511 = vtanh.pop %v479
      %v512 = vtanh.pop %v480
      %v513 = vtanh.pop %v481
      %v514 = vtanh.pop %v482
      %v515 = vtanh.pop %v483
      %v516 = vtanh.pop %v484
      %v517 = vtanh.pop %v485
      %v518 = vtanh.pop %v486
      %v519 = vtanh.pop %v487
      %v520 = vtanh.pop %v488
      %v521 = vtanh.pop %v489
      %v522 = vtanh.pop %v490
      %v523 = vtanh.pop %v491
      %v524 = vtanh.pop %v492
      %v525 = vtanh.pop %v493
      %v526 = vtanh.pop %v494
      %v527 = vtanh.pop %v495
      %v528 = vtanh.pop %v496
      %v529 = vtanh.pop %v497
      %v530 = vtanh.pop %v498
      %v531 = vtanh.pop %v499
      %v532 = vtanh.pop %v500
      %v533 = vtanh.pop %v501
      %v534 = vtanh.pop %v502
      %v535 = vtanh.pop %v503
      %v536 = vtanh.pop %v504
      %v537 = vtanh.pop %v505
      %v538 = vtanh.pop %v506
      %v539 = vtanh.pop %v507
      %v540 = vadd.f32 %v508, 1.0
      %v541 = vadd.f32 %v509, 1.0
      %v542 = vadd.f32 %v510, 1.0
      %v543 = vadd.f32 %v511, 1.0
      %v544 = vadd.f32 %v512, 1.0
      %v545 = vadd.f32 %v513, 1.0
      %v546 = vadd.f32 %v514, 1.0
      %v547 = vadd.f32 %v515, 1.0
      %v548 = vadd.f32 %v516, 1.0
      %v549 = vadd.f32 %v517, 1.0
      %v550 = vadd.f32 %v518, 1.0
      %v551 = vadd.f32 %v519, 1.0
      %v552 = vadd.f32 %v520, 1.0
      %v553 = vadd.f32 %v521, 1.0
      %v554 = vadd.f32 %v522, 1.0
      %v555 = vadd.f32 %v523, 1.0
      %v556 = vadd.f32 %v524, 1.0
      %v557 = vadd.f32 %v525, 1.0
      %v558 = vadd.f32 %v526, 1.0
      %v559 = vadd.f32 %v527, 1.0
      %v560 = vadd.f32 %v528, 1.0
      %v561 = vadd.f32 %v529, 1.0
      %v562 = vadd.f32 %v530, 1.0
      %v563 = vadd.f32 %v531, 1.0
      %v564 = vadd.f32 %v532, 1.0
      %v565 = vadd.f32 %v533, 1.0
      %v566 = vadd.f32 %v534, 1.0
      %v567 = vadd.f32 %v535, 1.0
      %v568 = vadd.f32 %v536, 1.0
      %v569 = vadd.f32 %v537, 1.0
      %v570 = vadd.f32 %v538, 1.0
      %v571 = vadd.f32 %v539, 1.0
      %v572 = vmul.f32 %v316, %v540
      %v573 = vmul.f32 %v317, %v541
      %v574 = vmul.f32 %v318, %v542
      %v575 = vmul.f32 %v319, %v543
      %v576 = vmul.f32 %v320, %v544
      %v577 = vmul.f32 %v321, %v545
      %v578 = vmul.f32 %v322, %v546
      %v579 = vmul.f32 %v323, %v547
      %v580 = vmul.f32 %v324, %v548
      %v581 = vmul.f32 %v325, %v549
      %v582 = vmul.f32 %v326, %v550
      %v583 = vmul.f32 %v327, %v551
      %v584 = vmul.f32 %v328, %v552
      %v585 = vmul.f32 %v329, %v553
      %v586 = vmul.f32 %v330, %v554
      %v587 = vmul.f32 %v331, %v555
      %v588 = vmul.f32 %v332, %v556
      %v589 = vmul.f32 %v333, %v557
      %v590 = vmul.f32 %v334, %v558
      %v591 = vmul.f32 %v335, %v559
      %v592 = vmul.f32 %v336, %v560
      %v593 = vmul.f32 %v337, %v561
      %v594 = vmul.f32 %v338, %v562
      %v595 = vmul.f32 %v339, %v563
      %v596 = vmul.f32 %v340, %v564
      %v597 = vmul.f32 %v341, %v565
      %v598 = vmul.f32 %v342, %v566
      %v599 = vmul.f32 %v343, %v567
      %v600 = vmul.f32 %v344, %v568
      %v601 = vmul.f32 %v345, %v569
      %v602 = vmul.f32 %v346, %v570
      %v603 = vmul.f32 %v347, %v571
      %v604 = vpack.c.bf16 %v573, %v572
      %v605 = vpack.c.bf16 %v575, %v574
      %v606 = vpack.c.bf16 %v577, %v576
      %v607 = vpack.c.bf16 %v579, %v578
      %v608 = vpack.c.bf16 %v581, %v580
      %v609 = vpack.c.bf16 %v583, %v582
      %v610 = vpack.c.bf16 %v585, %v584
      %v611 = vpack.c.bf16 %v587, %v586
      %v612 = vpack.c.bf16 %v589, %v588
      %v613 = vpack.c.bf16 %v591, %v590
      %v614 = vpack.c.bf16 %v593, %v592
      %v615 = vpack.c.bf16 %v595, %v594
      %v616 = vpack.c.bf16 %v597, %v596
      %v617 = vpack.c.bf16 %v599, %v598
      %v618 = vpack.c.bf16 %v601, %v600
      %v619 = vpack.c.bf16 %v603, %v602
      %v636 = vunpack.c.l.b16 %v604
      %v637 = vunpack.c.h.b16 %v604
      %v638 = vunpack.c.l.b16 %v605
      %v639 = vunpack.c.h.b16 %v605
      %v640 = vunpack.c.l.b16 %v606
      %v641 = vunpack.c.h.b16 %v606
      %v642 = vunpack.c.l.b16 %v607
      %v643 = vunpack.c.h.b16 %v607
      %v644 = vunpack.c.l.b16 %v608
      %v645 = vunpack.c.h.b16 %v608
      %v646 = vunpack.c.l.b16 %v609
      %v647 = vunpack.c.h.b16 %v609
      %v648 = vunpack.c.l.b16 %v610
      %v649 = vunpack.c.h.b16 %v610
      %v650 = vunpack.c.l.b16 %v611
      %v651 = vunpack.c.h.b16 %v611
      %v652 = vunpack.c.l.b16 %v612
      %v653 = vunpack.c.h.b16 %v612
      %v654 = vunpack.c.l.b16 %v613
      %v655 = vunpack.c.h.b16 %v613
      %v656 = vunpack.c.l.b16 %v614
      %v657 = vunpack.c.h.b16 %v614
      %v658 = vunpack.c.l.b16 %v615
      %v659 = vunpack.c.h.b16 %v615
      %v660 = vunpack.c.l.b16 %v616
      %v661 = vunpack.c.h.b16 %v616
      %v662 = vunpack.c.l.b16 %v617
      %v663 = vunpack.c.h.b16 %v617
      %v664 = vunpack.c.l.b16 %v618
      %v665 = vunpack.c.h.b16 %v618
      %v666 = vunpack.c.l.b16 %v619
      %v667 = vunpack.c.h.b16 %v619
      %v668 = vpack.c.b16 %v636, %v636
      %v669 = vpack.c.b16 %v637, %v637
      %v670 = vpack.c.b16 %v638, %v638
      %v671 = vpack.c.b16 %v639, %v639
      %v672 = vpack.c.b16 %v640, %v640
      %v673 = vpack.c.b16 %v641, %v641
      %v674 = vpack.c.b16 %v642, %v642
      %v675 = vpack.c.b16 %v643, %v643
      %v676 = vpack.c.b16 %v644, %v644
      %v677 = vpack.c.b16 %v645, %v645
      %v678 = vpack.c.b16 %v646, %v646
      %v679 = vpack.c.b16 %v647, %v647
      %v680 = vpack.c.b16 %v648, %v648
      %v681 = vpack.c.b16 %v649, %v649
      %v682 = vpack.c.b16 %v650, %v650
      %v683 = vpack.c.b16 %v651, %v651
      %v684 = vpack.c.b16 %v652, %v652
      %v685 = vpack.c.b16 %v653, %v653
      %v686 = vpack.c.b16 %v654, %v654
      %v687 = vpack.c.b16 %v655, %v655
      %v688 = vpack.c.b16 %v656, %v656
      %v689 = vpack.c.b16 %v657, %v657
      %v690 = vpack.c.b16 %v658, %v658
      %v691 = vpack.c.b16 %v659, %v659
      %v692 = vpack.c.b16 %v660, %v660
      %v693 = vpack.c.b16 %v661, %v661
      %v694 = vpack.c.b16 %v662, %v662
      %v695 = vpack.c.b16 %v663, %v663
      %v696 = vpack.c.b16 %v664, %v664
      %v697 = vpack.c.b16 %v665, %v665
      %v698 = vpack.c.b16 %v666, %v666
      %v699 = vpack.c.b16 %v667, %v667
      %732 = vst [vmem:[%s172] sm:$0xf] %v668
      %733 = vst [vmem:[%s172 + $0x4] sm:$0xf] %v669
      %734 = vst [vmem:[%s172 + $0x8] sm:$0xf] %v670
      %735 = vst [vmem:[%s172 + $0xc] sm:$0xf] %v671
      %736 = vst [vmem:[%s172 + $0x10] sm:$0xf] %v672
      %737 = vst [vmem:[%s172 + $0x14] sm:$0xf] %v673
      %738 = vst [vmem:[%s172 + $0x18] sm:$0xf] %v674
      %739 = vst [vmem:[%s172 + $0x1c] sm:$0xf] %v675
      %740 = vst [vmem:[%s172 + $0x20] sm:$0xf] %v676
      %741 = vst [vmem:[%s172 + $0x24] sm:$0xf] %v677
      %742 = vst [vmem:[%s172 + $0x28] sm:$0xf] %v678
      %743 = vst [vmem:[%s172 + $0x2c] sm:$0xf] %v679
      %744 = vst [vmem:[%s172 + $0x30] sm:$0xf] %v680
      %745 = vst [vmem:[%s172 + $0x34] sm:$0xf] %v681
      %746 = vst [vmem:[%s172 + $0x38] sm:$0xf] %v682
      %747 = vst [vmem:[%s172 + $0x3c] sm:$0xf] %v683
      %748 = vst [vmem:[%s172 + $0x40] sm:$0xf] %v684
      %749 = vst [vmem:[%s172 + $0x44] sm:$0xf] %v685
      %750 = vst [vmem:[%s172 + $0x48] sm:$0xf] %v686
      %751 = vst [vmem:[%s172 + $0x4c] sm:$0xf] %v687
      %752 = vst [vmem:[%s172 + $0x50] sm:$0xf] %v688
      %753 = vst [vmem:[%s172 + $0x54] sm:$0xf] %v689
      %754 = vst [vmem:[%s172 + $0x58] sm:$0xf] %v690
      %755 = vst [vmem:[%s172 + $0x5c] sm:$0xf] %v691
      %756 = vst [vmem:[%s172 + $0x60] sm:$0xf] %v692
      %757 = vst [vmem:[%s172 + $0x64] sm:$0xf] %v693
      %758 = vst [vmem:[%s172 + $0x68] sm:$0xf] %v694
      %759 = vst [vmem:[%s172 + $0x6c] sm:$0xf] %v695
      %760 = vst [vmem:[%s172 + $0x70] sm:$0xf] %v696
      %761 = vst [vmem:[%s172 + $0x74] sm:$0xf] %v697
      %762 = vst [vmem:[%s172 + $0x78] sm:$0xf] %v698
      %763 = vst [vmem:[%s172 + $0x7c] sm:$0xf] %v699
      %s764 = smul.u32 32, %s14
      %p765 = scmp.lt.s32.totalorder %s764, 63
      %s766 = scalar_select %p765, %s764, 63
      %s767 = smul.addr %s766, 4
      %s768 = scalar_lea.vmem %s3, %s767
      // Predicated region
      $region33: #{deformable_proj_embed_forward.3} parent=31 // pred_check
        %p769 = pneg %p100
      $region34: #{deformable_proj_embed_forward.3} parent=31 // pred_check_branch
        %771 = sbr.rel (%p769) target = $region36
      $region35: #{deformable_proj_embed_forward.3} parent=31 // pred_region
        %s772 = smul.u32 32, %s14
      $region36: #{deformable_proj_embed_forward.3} parent=31 // pred_fallthru
        _
    $region32: #{deformable_proj_embed_forward.3} parent=5 // pred_fallthru
      _
    %p773 = scmp.le.s32.totalorder 2, %s9
    // Predicated region
    $region37: #{deformable_proj_embed_forward.3} parent=5 // pred_check
      %p774 = pneg %p773
    $region38: #{deformable_proj_embed_forward.3} parent=5 // pred_check_branch
      %776 = sbr.rel (%p774) target = $region40
    $region39: #{deformable_proj_embed_forward.3} parent=5 // pred_region
      %s777 = ssub.s32 %s9, 2
      // Predicated region
      $region41: #{deformable_proj_embed_forward.3} parent=39 // pred_check
        %p778 = pneg %p106
      $region42: #{deformable_proj_embed_forward.3} parent=39 // pred_check_branch
        %780 = sbr.rel (%p778) target = $region44
      $region43: #{deformable_proj_embed_forward.3} parent=39 // pred_region
        %s781 = smul.u32 32, %s15
        %p782 = scmp.lt.s32.totalorder %s781, 63
        %s783 = scalar_select %p782, %s781, 63
        %s784 = smul.addr %s783, 4
        %s785 = scalar_lea.vmem %s3, %s784
      $region44: #{deformable_proj_embed_forward.3} parent=39 // pred_fallthru
        _
    $region40: #{deformable_proj_embed_forward.3} parent=5 // pred_fallthru
      _
  $region6: #{deformable_proj_embed_forward.3} parent=0 // loop_footer
    %s13 = sadd.s32 1, %s9
  $region7: #{deformable_proj_embed_forward.3} parent=0 // loop_footer_branch
    %8 = sbr.rel target = $region3
  $region8: #{deformable_proj_embed_forward.3} parent=0 // loop_exit
    _

// kernel: deformable_proj_embed_forward.2
$region0: #{deformable_proj_embed_forward.2}
  #allocation0 [shape = 'u32[]', space=smem, size = 0x4, offset = 0x4, fixed_abs, tag = 'smem constant byte address 0x4 - core index']
  #allocation1 [shape = 'u32[144,128]{1,0:T(1,128)}', space=vmem, size = 0x12000, scoped, tag = 'internal scratch']
  %s0 = inlined_call_operand.vmem [shape: bf16[512,128], index: 0, kind: input, shape index: {}]
  %s1 = inlined_call_operand.vmem [shape: bf16[128,128], index: 1, kind: input, shape index: {}]
  %s2 = inlined_call_operand.vmem [shape: f32[1,128], index: 2, kind: input, shape index: {}]
  %s3 = inlined_call_operand.vmem [shape: bf16[512,128], index: 3, kind: output, shape index: {0}]
  %s4 = inlined_call_operand.vmem [shape: f32[2,2,128], index: 4, kind: output, shape index: {1}]
  %5 = xla_tuple %s3, %s4
  %s6 = sld [smem:[#allocation0]]
  $region53: #{deformable_proj_embed_forward.2} parent=0
    _
  %s8 = ssub.s32 1, %s6
  %s9 = scalar_select 0, %s8, %s6
  loop: start=0, step=1, limit=4
  $region2: #{deformable_proj_embed_forward.2} parent=0 // loop_pre_header
    _
  $region3: #{deformable_proj_embed_forward.2} parent=0 // loop_header
    %s11 = sphi 0, %s15
    %p12 = scmp.ge.s32.totalorder %s11, 4
    %s21 = sphi 0, %s23
    %s24 = sphi 0, %s21
    %s25 = sphi 0, %s24
    %s41 = sphi 0, %s25
    %s45 = sphi 0, %s45
    %s47 = sphi 0, %s45
    %s48 = sphi 0, %s47
    %s62 = sphi 0, %s48
    %s66 = sphi 0, %s66
    %s68 = sphi 0, %s66
    %s69 = sphi 0, %s68
    %s83 = sphi 0, %s69
    %s89 = sphi 0, %s91
    %s92 = sphi 0, %s89
    %s93 = sphi 0, %s92
    %s109 = sphi 0, %s93
    %s115 = sphi 0, %s117
    %s118 = sphi 0, %s115
    %s119 = sphi 0, %s118
    %s135 = sphi 0, %s119
  $region4: #{deformable_proj_embed_forward.2} parent=0 // loop_header_branch
    %14 = sbr.rel (%p12) target = $region8
  $region5: #{deformable_proj_embed_forward.2} parent=0 // loop_body
    %s16 = ssub.s32 %s11, 1
    %s17 = ssub.s32 %s11, 2
    %s18 = sadd.s32 %s11, 1
    %s19 = ssub.s32 %s11, %s18
    %p20 = scmp.eq.s32.totalorder %s19, 0
    %s22 = sadd.s32 %s21, 1
    %s23 = scalar_select %p20, %s21, %s22
    %p26 = pneg %p20
    %p27 = scmp.eq.s32.totalorder %s11, 1
    %p28 = por %p26, %p27
    %p29 = scmp.ne.s32.totalorder %s21, %s24
    %p30 = scmp.eq.s32.totalorder %s11, 0
    %p31 = por %p29, %p30
    %p32 = scmp.ne.s32.totalorder %s21, %s24
    %p33 = scmp.eq.s32.totalorder %s16, 1
    %p34 = por %p32, %p33
    %p35 = scmp.ne.s32.totalorder %s24, %s25
    %p36 = scmp.eq.s32.totalorder %s16, 0
    %p37 = por %p35, %p36
    %p38 = scmp.ne.s32.totalorder %s24, %s25
    %p39 = scmp.eq.s32.totalorder %s17, 1
    %p40 = por %p38, %p39
    %p42 = scmp.ne.s32.totalorder %s25, %s41
    %p43 = scmp.eq.s32.totalorder %s17, 0
    %p44 = por %p42, %p43
    %s46 = sadd.s32 %s45, 1
    %p49 = scmp.eq.s32.totalorder %s11, 1
    %p50 = scmp.ne.s32.totalorder %s45, %s47
    %p51 = scmp.eq.s32.totalorder %s11, 0
    %p52 = por %p50, %p51
    %p53 = scmp.ne.s32.totalorder %s45, %s47
    %p54 = scmp.eq.s32.totalorder %s16, 1
    %p55 = por %p53, %p54
    %p56 = scmp.ne.s32.totalorder %s47, %s48
    %p57 = scmp.eq.s32.totalorder %s16, 0
    %p58 = por %p56, %p57
    %p59 = scmp.ne.s32.totalorder %s47, %s48
    %p60 = scmp.eq.s32.totalorder %s17, 1
    %p61 = por %p59, %p60
    %p63 = scmp.ne.s32.totalorder %s48, %s62
    %p64 = scmp.eq.s32.totalorder %s17, 0
    %p65 = por %p63, %p64
    %s67 = sadd.s32 %s66, 1
    %p70 = scmp.eq.s32.totalorder %s11, 1
    %p71 = scmp.ne.s32.totalorder %s66, %s68
    %p72 = scmp.eq.s32.totalorder %s11, 0
    %p73 = por %p71, %p72
    %p74 = scmp.ne.s32.totalorder %s66, %s68
    %p75 = scmp.eq.s32.totalorder %s16, 1
    %p76 = por %p74, %p75
    %p77 = scmp.ne.s32.totalorder %s68, %s69
    %p78 = scmp.eq.s32.totalorder %s16, 0
    %p79 = por %p77, %p78
    %p80 = scmp.ne.s32.totalorder %s68, %s69
    %p81 = scmp.eq.s32.totalorder %s17, 1
    %p82 = por %p80, %p81
    %p84 = scmp.ne.s32.totalorder %s69, %s83
    %p85 = scmp.eq.s32.totalorder %s17, 0
    %p86 = por %p84, %p85
    %s87 = ssub.s32 %s11, %s18
    %p88 = scmp.eq.s32.totalorder %s87, 0
    %s90 = sadd.s32 %s89, 1
    %s91 = scalar_select %p88, %s89, %s90
    %p94 = pneg %p88
    %p95 = scmp.eq.s32.totalorder %s11, 1
    %p96 = por %p94, %p95
    %p97 = scmp.ne.s32.totalorder %s89, %s92
    %p98 = scmp.eq.s32.totalorder %s11, 0
    %p99 = por %p97, %p98
    %p100 = scmp.ne.s32.totalorder %s89, %s92
    %p101 = scmp.eq.s32.totalorder %s16, 1
    %p102 = por %p100, %p101
    %p103 = scmp.ne.s32.totalorder %s92, %s93
    %p104 = scmp.eq.s32.totalorder %s16, 0
    %p105 = por %p103, %p104
    %p106 = scmp.ne.s32.totalorder %s92, %s93
    %p107 = scmp.eq.s32.totalorder %s17, 1
    %p108 = por %p106, %p107
    %p110 = scmp.ne.s32.totalorder %s93, %s109
    %p111 = scmp.eq.s32.totalorder %s17, 0
    %p112 = por %p110, %p111
    %s113 = ssub.s32 %s11, %s18
    %p114 = scmp.eq.s32.totalorder %s113, 0
    %s116 = sadd.s32 %s115, 1
    %s117 = scalar_select %p114, %s115, %s116
    %p120 = pneg %p114
    %p121 = scmp.eq.s32.totalorder %s11, 1
    %p122 = por %p120, %p121
    %p123 = scmp.ne.s32.totalorder %s115, %s118
    %p124 = scmp.eq.s32.totalorder %s11, 0
    %p125 = por %p123, %p124
    %p126 = scmp.ne.s32.totalorder %s115, %s118
    %p127 = scmp.eq.s32.totalorder %s16, 1
    %p128 = por %p126, %p127
    %p129 = scmp.ne.s32.totalorder %s118, %s119
    %p130 = scmp.eq.s32.totalorder %s16, 0
    %p131 = por %p129, %p130
    %p132 = scmp.ne.s32.totalorder %s118, %s119
    %p133 = scmp.eq.s32.totalorder %s17, 1
    %p134 = por %p132, %p133
    %p136 = scmp.ne.s32.totalorder %s119, %s135
    %p137 = scmp.eq.s32.totalorder %s17, 0
    %p138 = por %p136, %p137
    %p139 = scmp.le.s32.totalorder 1, %s11
    %p140 = scmp.lt.s32.totalorder %s11, 3
    %p141 = pnand %p139, %p140
    %p142 = pneg %p141
    // Predicated region
    $region9: #{deformable_proj_embed_forward.2} parent=5 // pred_check
      _
    $region10: #{deformable_proj_embed_forward.2} parent=5 // pred_check_branch
      %144 = sbr.rel (%p141) target = $region12
    $region11: #{deformable_proj_embed_forward.2} parent=5 // pred_region
      %s145 = ssub.s32 %s11, 1
      // Predicated region
      $region13: #{deformable_proj_embed_forward.2} parent=11 // pred_check
        %p146 = pneg %p58
      $region14: #{deformable_proj_embed_forward.2} parent=11 // pred_check_branch
        %148 = sbr.rel (%p146) target = $region16
      $region15: #{deformable_proj_embed_forward.2} parent=11 // pred_region
        _
      $region16: #{deformable_proj_embed_forward.2} parent=11 // pred_fallthru
        _
      // Predicated region
      $region17: #{deformable_proj_embed_forward.2} parent=11 // pred_check
        %p149 = pneg %p79
      $region18: #{deformable_proj_embed_forward.2} parent=11 // pred_check_branch
        %151 = sbr.rel (%p149) target = $region20
      $region19: #{deformable_proj_embed_forward.2} parent=11 // pred_region
        _
      $region20: #{deformable_proj_embed_forward.2} parent=11 // pred_fallthru
        _
    $region12: #{deformable_proj_embed_forward.2} parent=5 // pred_fallthru
      _
    %p152 = scmp.lt.s32.totalorder %s11, 2
    // Predicated region
    $region21: #{deformable_proj_embed_forward.2} parent=5 // pred_check
      %p153 = pneg %p152
    $region22: #{deformable_proj_embed_forward.2} parent=5 // pred_check_branch
      %155 = sbr.rel (%p153) target = $region24
    $region23: #{deformable_proj_embed_forward.2} parent=5 // pred_region
      // Predicated region
      $region25: #{deformable_proj_embed_forward.2} parent=23 // pred_check
        %p156 = pneg %p31
      $region26: #{deformable_proj_embed_forward.2} parent=23 // pred_check_branch
        %158 = sbr.rel (%p156) target = $region28
      $region27: #{deformable_proj_embed_forward.2} parent=23 // pred_region
        %s159 = smul.u32 32, %s11
        %p160 = scmp.lt.s32.totalorder %s159, 63
        %s161 = scalar_select %p160, %s159, 63
        %s162 = smul.addr %s161, 4
        %s163 = scalar_lea.vmem %s0, %s162
        %s164 = smul.u32 32, %s11
      $region28: #{deformable_proj_embed_forward.2} parent=23 // pred_fallthru
        _
    $region24: #{deformable_proj_embed_forward.2} parent=5 // pred_fallthru
      _
    %p165 = scmp.le.s32.totalorder 1, %s11
    %p166 = scmp.lt.s32.totalorder %s11, 3
    %p167 = pnand %p165, %p166
    %p168 = pneg %p167
    // Predicated region
    $region29: #{deformable_proj_embed_forward.2} parent=5 // pred_check
      _
    $region30: #{deformable_proj_embed_forward.2} parent=5 // pred_check_branch
      %170 = sbr.rel (%p167) target = $region32
    $region31: #{deformable_proj_embed_forward.2} parent=5 // pred_region
      %s171 = ssub.s32 %s11, 1
      %s172 = smul.u32 32, %s16
      %p173 = scmp.lt.s32.totalorder %s172, 63
      %s174 = scalar_select %p173, %s172, 63
      %s175 = smul.addr %s174, 4
      %s176 = scalar_lea.vmem %s0, %s175
      %p177 = pneg %p37
      %p178 = pneg %p34
      %p179 = pneg %p58
      %p180 = pneg %p55
      %p181 = pneg %p79
      %p182 = pneg %p76
      %p183 = pneg %p105
      %p184 = pneg %p102
      %s185 = smul.u32 32, %s16
      %p186 = scmp.lt.s32.totalorder %s185, 63
      %s187 = scalar_select %p186, %s185, 63
      %s188 = smul.addr %s187, 4
      %s189 = scalar_lea.vmem %s3, %s188
      %p190 = pneg %p131
      %p191 = pneg %p128
      %p192 = scmp.lt.s32.totalorder %s16, 1
      %s193 = scalar_select %p192, %s16, 1
      %s194 = smul.addr %s193, 2
      %s195 = scalar_lea.vmem %s4, %s194
      %s196 = smul.u32 32, %s16
      %p197 = scmp.lt.s32.totalorder %s196, 63
      %s198 = scalar_select %p197, %s196, 63
      %s199 = smul.addr %s198, 4
      %s200 = scalar_lea.vmem %s0, %s199
      %s201 = smul.u32 32, %s16
      %s202 = smul.u32 32, %s16
      %p203 = scmp.lt.s32.totalorder %s202, 63
      %s204 = scalar_select %p203, %s202, 63
      %s205 = smul.addr %s204, 4
      %s206 = scalar_lea.vmem %s3, %s205
      %s207 = smul.u32 32, %s16
      %p208 = scmp.lt.s32.totalorder %s16, 1
      %s209 = scalar_select %p208, %s16, 1
      %s210 = smul.addr %s209, 2
      %s211 = scalar_lea.vmem %s4, %s210
      %v213 = vld [vmem:[%s200] sm:$0xf]
      %v214 = vld [vmem:[%s200 + $0x4] sm:$0xf]
      %v215 = vld [vmem:[%s200 + $0x8] sm:$0xf]
      %v216 = vld [vmem:[%s200 + $0xc] sm:$0xf]
      %v217 = vld [vmem:[%s200 + $0x10] sm:$0xf]
      %v218 = vld [vmem:[%s200 + $0x14] sm:$0xf]
      %v219 = vld [vmem:[%s200 + $0x18] sm:$0xf]
      %v220 = vld [vmem:[%s200 + $0x1c] sm:$0xf]
      %v221 = vld [vmem:[%s200 + $0x20] sm:$0xf]
      %v222 = vld [vmem:[%s200 + $0x24] sm:$0xf]
      %v223 = vld [vmem:[%s200 + $0x28] sm:$0xf]
      %v224 = vld [vmem:[%s200 + $0x2c] sm:$0xf]
      %v225 = vld [vmem:[%s200 + $0x30] sm:$0xf]
      %v226 = vld [vmem:[%s200 + $0x34] sm:$0xf]
      %v227 = vld [vmem:[%s200 + $0x38] sm:$0xf]
      %v228 = vld [vmem:[%s200 + $0x3c] sm:$0xf]
      %v229 = vld [vmem:[%s200 + $0x40] sm:$0xf]
      %v230 = vld [vmem:[%s200 + $0x44] sm:$0xf]
      %v231 = vld [vmem:[%s200 + $0x48] sm:$0xf]
      %v232 = vld [vmem:[%s200 + $0x4c] sm:$0xf]
      %v233 = vld [vmem:[%s200 + $0x50] sm:$0xf]
      %v234 = vld [vmem:[%s200 + $0x54] sm:$0xf]
      %v235 = vld [vmem:[%s200 + $0x58] sm:$0xf]
      %v236 = vld [vmem:[%s200 + $0x5c] sm:$0xf]
      %v237 = vld [vmem:[%s200 + $0x60] sm:$0xf]
      %v238 = vld [vmem:[%s200 + $0x64] sm:$0xf]
      %v239 = vld [vmem:[%s200 + $0x68] sm:$0xf]
      %v240 = vld [vmem:[%s200 + $0x6c] sm:$0xf]
      %v241 = vld [vmem:[%s200 + $0x70] sm:$0xf]
      %v242 = vld [vmem:[%s200 + $0x74] sm:$0xf]
      %v243 = vld [vmem:[%s200 + $0x78] sm:$0xf]
      %v244 = vld [vmem:[%s200 + $0x7c] sm:$0xf]
      %v245 = vld [vmem:[%s1] sm:$0xf]
      %v246 = vld [vmem:[%s1 + $0x4] sm:$0xf]
      %v247 = vld [vmem:[%s1 + $0x8] sm:$0xf]
      %v248 = vld [vmem:[%s1 + $0xc] sm:$0xf]
      %v249 = vld [vmem:[%s1 + $0x10] sm:$0xf]
      %v250 = vld [vmem:[%s1 + $0x14] sm:$0xf]
      %v251 = vld [vmem:[%s1 + $0x18] sm:$0xf]
      %v252 = vld [vmem:[%s1 + $0x1c] sm:$0xf]
      %v253 = vld [vmem:[%s1 + $0x20] sm:$0xf]
      %v254 = vld [vmem:[%s1 + $0x24] sm:$0xf]
      %v255 = vld [vmem:[%s1 + $0x28] sm:$0xf]
      %v256 = vld [vmem:[%s1 + $0x2c] sm:$0xf]
      %v257 = vld [vmem:[%s1 + $0x30] sm:$0xf]
      %v258 = vld [vmem:[%s1 + $0x34] sm:$0xf]
      %v259 = vld [vmem:[%s1 + $0x38] sm:$0xf]
      %v260 = vld [vmem:[%s1 + $0x3c] sm:$0xf]
      %v261 = vld [vmem:[%s2] sm:$0x1]
      %v263 = vlaneseq
      %v264 = vshrl.u32 %v263, 7
      %v265 = vsub.s32 0, %v264
      %v266 = vrot.slane %v261, %v265
      %v300 = vunpack.c.l.b16 %v213
      %v301 = vunpack.c.l.b16 %v214
      %v302 = vunpack.c.l.b16 %v215
      %v303 = vunpack.c.l.b16 %v216
      %v304 = vunpack.c.l.b16 %v217
      %v305 = vunpack.c.l.b16 %v218
      %v306 = vunpack.c.l.b16 %v219
      %v307 = vunpack.c.l.b16 %v220
      %v308 = vunpack.c.l.b16 %v221
      %v309 = vunpack.c.l.b16 %v222
      %v310 = vunpack.c.l.b16 %v223
      %v311 = vunpack.c.l.b16 %v224
      %v312 = vunpack.c.l.b16 %v225
      %v313 = vunpack.c.l.b16 %v226
      %v314 = vunpack.c.l.b16 %v227
      %v315 = vunpack.c.l.b16 %v228
      %v316 = vunpack.c.l.b16 %v229
      %v317 = vunpack.c.l.b16 %v230
      %v318 = vunpack.c.l.b16 %v231
      %v319 = vunpack.c.l.b16 %v232
      %v320 = vunpack.c.l.b16 %v233
      %v321 = vunpack.c.l.b16 %v234
      %v322 = vunpack.c.l.b16 %v235
      %v323 = vunpack.c.l.b16 %v236
      %v324 = vunpack.c.l.b16 %v237
      %v325 = vunpack.c.l.b16 %v238
      %v326 = vunpack.c.l.b16 %v239
      %v327 = vunpack.c.l.b16 %v240
      %v328 = vunpack.c.l.b16 %v241
      %v329 = vunpack.c.l.b16 %v242
      %v330 = vunpack.c.l.b16 %v243
      %v331 = vunpack.c.l.b16 %v244
      %v332 = vpack.c.b16 %v301, %v300
      %v333 = vpack.c.b16 %v303, %v302
      %v334 = vpack.c.b16 %v305, %v304
      %v335 = vpack.c.b16 %v307, %v306
      %v336 = vpack.c.b16 %v309, %v308
      %v337 = vpack.c.b16 %v311, %v310
      %v338 = vpack.c.b16 %v313, %v312
      %v339 = vpack.c.b16 %v315, %v314
      %v340 = vpack.c.b16 %v317, %v316
      %v341 = vpack.c.b16 %v319, %v318
      %v342 = vpack.c.b16 %v321, %v320
      %v343 = vpack.c.b16 %v323, %v322
      %v344 = vpack.c.b16 %v325, %v324
      %v345 = vpack.c.b16 %v327, %v326
      %v346 = vpack.c.b16 %v329, %v328
      %v347 = vpack.c.b16 %v331, %v330
      %v380 = vunpack.c.l.b16 %v245
      %v381 = vunpack.c.l.b16 %v246
      %v382 = vunpack.c.l.b16 %v247
      %v383 = vunpack.c.l.b16 %v248
      %v384 = vunpack.c.l.b16 %v249
      %v385 = vunpack.c.l.b16 %v250
      %v386 = vunpack.c.l.b16 %v251
      %v387 = vunpack.c.l.b16 %v252
      %v388 = vunpack.c.l.b16 %v253
      %v389 = vunpack.c.l.b16 %v254
      %v390 = vunpack.c.l.b16 %v255
      %v391 = vunpack.c.l.b16 %v256
      %v392 = vunpack.c.l.b16 %v257
      %v393 = vunpack.c.l.b16 %v258
      %v394 = vunpack.c.l.b16 %v259
      %v395 = vunpack.c.l.b16 %v260
      %v396 = vpack.c.b16 %v381, %v380
      %v397 = vpack.c.b16 %v383, %v382
      %v398 = vpack.c.b16 %v385, %v384
      %v399 = vpack.c.b16 %v387, %v386
      %v400 = vpack.c.b16 %v389, %v388
      %v401 = vpack.c.b16 %v391, %v390
      %v402 = vpack.c.b16 %v393, %v392
      %v403 = vpack.c.b16 %v395, %v394
      %412 = vmatprep.subr.bf16.mxu0 0
      %413 = vmatpush1.bf16.msra.mxu0 %v396
      %414 = vmatprep.subr.bf16.mxu0 0
      %415 = vmatpush1.bf16.msra.mxu0 %v397
      %416 = vmatprep.subr.bf16.mxu0 0
      %417 = vmatpush1.bf16.msra.mxu0 %v398
      %418 = vmatprep.subr.bf16.mxu0 0
      %419 = vmatpush1.bf16.msra.mxu0 %v399
      %420 = vmatprep.subr.bf16.mxu0 0
      %421 = vmatpush1.bf16.msra.mxu0 %v400
      %422 = vmatprep.subr.bf16.mxu0 0
      %423 = vmatpush1.bf16.msra.mxu0 %v401
      %424 = vmatprep.subr.bf16.mxu0 0
      %425 = vmatpush1.bf16.msra.mxu0 %v402
      %426 = vmatprep.subr.bf16.mxu0 0
      %427 = vmatpush1.bf16.msra.mxu0 %v403
      %428 = vmatprep.subr.bf16.mxu0 0
      %429 = vmatpush1.bf16.msra.mxu0 0
      %430 = vmatprep.subr.bf16.mxu0 0
      %431 = vmatpush1.bf16.msra.mxu0 0
      %432 = vmatprep.subr.bf16.mxu0 0
      %433 = vmatpush1.bf16.msra.mxu0 0
      %434 = vmatprep.subr.bf16.mxu0 0
      %435 = vmatpush1.bf16.msra.mxu0 0
      %436 = vmatprep.subr.bf16.mxu0 0
      %437 = vmatpush1.bf16.msra.mxu0 0
      %438 = vmatprep.subr.bf16.mxu0 0
      %439 = vmatpush1.bf16.msra.mxu0 0
      %440 = vmatprep.subr.bf16.mxu0 0
      %441 = vmatpush1.bf16.msra.mxu0 0
      %442 = vmatprep.subr.bf16.mxu0 0
      %443 = vmatpush1.bf16.msra.mxu0 0
      %444 = vmatprep.mubr.bf16.mxu0 0
      %445 = vmatmul.mubr.bf16.gmra.mrb[0].mxu0 %v332
      %v446 = vpop.f32.mrb[0].mxu0
      %v447 = vadd.f32 %v266, %v446
      %v448 = vpop.f32.mrb[0].mxu0
      %v449 = vpop.f32.mrb[0].mxu0
      %v450 = vadd.f32 %v266, %v449
      %v451 = vpop.f32.mrb[0].mxu0
      %452 = vmatprep.mubr.bf16.mxu0 0
      %453 = vmatmul.mubr.bf16.gmra.mrb[0].mxu0 %v333
      %v454 = vpop.f32.mrb[0].mxu0
      %v455 = vadd.f32 %v266, %v454
      %v456 = vpop.f32.mrb[0].mxu0
      %v457 = vpop.f32.mrb[0].mxu0
      %v458 = vadd.f32 %v266, %v457
      %v459 = vpop.f32.mrb[0].mxu0
      %460 = vmatprep.mubr.bf16.mxu0 0
      %461 = vmatmul.mubr.bf16.gmra.mrb[0].mxu0 %v334
      %v462 = vpop.f32.mrb[0].mxu0
      %v463 = vadd.f32 %v266, %v462
      %v464 = vpop.f32.mrb[0].mxu0
      %v465 = vpop.f32.mrb[0].mxu0
      %v466 = vadd.f32 %v266, %v465
      %v467 = vpop.f32.mrb[0].mxu0
      %468 = vmatprep.mubr.bf16.mxu0 0
      %469 = vmatmul.mubr.bf16.gmra.mrb[0].mxu0 %v335
      %v470 = vpop.f32.mrb[0].mxu0
      %v471 = vadd.f32 %v266, %v470
      %v472 = vpop.f32.mrb[0].mxu0
      %v473 = vpop.f32.mrb[0].mxu0
      %v474 = vadd.f32 %v266, %v473
      %v475 = vpop.f32.mrb[0].mxu0
      %476 = vmatprep.mubr.bf16.mxu0 0
      %477 = vmatmul.mubr.bf16.gmra.mrb[0].mxu0 %v336
      %v478 = vpop.f32.mrb[0].mxu0
      %v479 = vadd.f32 %v266, %v478
      %v480 = vpop.f32.mrb[0].mxu0
      %v481 = vpop.f32.mrb[0].mxu0
      %v482 = vadd.f32 %v266, %v481
      %v483 = vpop.f32.mrb[0].mxu0
      %484 = vmatprep.mubr.bf16.mxu0 0
      %485 = vmatmul.mubr.bf16.gmra.mrb[0].mxu0 %v337
      %v486 = vpop.f32.mrb[0].mxu0
      %v487 = vadd.f32 %v266, %v486
      %v488 = vpop.f32.mrb[0].mxu0
      %v489 = vpop.f32.mrb[0].mxu0
      %v490 = vadd.f32 %v266, %v489
      %v491 = vpop.f32.mrb[0].mxu0
      %492 = vmatprep.mubr.bf16.mxu0 0
      %493 = vmatmul.mubr.bf16.gmra.mrb[0].mxu0 %v338
      %v494 = vpop.f32.mrb[0].mxu0
      %v495 = vadd.f32 %v266, %v494
      %v496 = vpop.f32.mrb[0].mxu0
      %v497 = vpop.f32.mrb[0].mxu0
      %v498 = vadd.f32 %v266, %v497
      %v499 = vpop.f32.mrb[0].mxu0
      %500 = vmatprep.mubr.bf16.mxu0 0
      %501 = vmatmul.mubr.bf16.gmra.mrb[0].mxu0 %v339
      %v502 = vpop.f32.mrb[0].mxu0
      %v503 = vadd.f32 %v266, %v502
      %v504 = vpop.f32.mrb[0].mxu0
      %v505 = vpop.f32.mrb[0].mxu0
      %v506 = vadd.f32 %v266, %v505
      %v507 = vpop.f32.mrb[0].mxu0
      %508 = vmatprep.mubr.bf16.mxu0 0
      %509 = vmatmul.mubr.bf16.gmra.mrb[0].mxu0 %v340
      %v510 = vpop.f32.mrb[0].mxu0
      %v511 = vadd.f32 %v266, %v510
      %v512 = vpop.f32.mrb[0].mxu0
      %v513 = vpop.f32.mrb[0].mxu0
      %v514 = vadd.f32 %v266, %v513
      %v515 = vpop.f32.mrb[0].mxu0
      %516 = vmatprep.mubr.bf16.mxu0 0
      %517 = vmatmul.mubr.bf16.gmra.mrb[0].mxu0 %v341
      %v518 = vpop.f32.mrb[0].mxu0
      %v519 = vadd.f32 %v266, %v518
      %v520 = vpop.f32.mrb[0].mxu0
      %v521 = vpop.f32.mrb[0].mxu0
      %v522 = vadd.f32 %v266, %v521
      %v523 = vpop.f32.mrb[0].mxu0
      %524 = vmatprep.mubr.bf16.mxu0 0
      %525 = vmatmul.mubr.bf16.gmra.mrb[0].mxu0 %v342
      %v526 = vpop.f32.mrb[0].mxu0
      %v527 = vadd.f32 %v266, %v526
      %v528 = vpop.f32.mrb[0].mxu0
      %v529 = vpop.f32.mrb[0].mxu0
      %v530 = vadd.f32 %v266, %v529
      %v531 = vpop.f32.mrb[0].mxu0
      %532 = vmatprep.mubr.bf16.mxu0 0
      %533 = vmatmul.mubr.bf16.gmra.mrb[0].mxu0 %v343
      %v534 = vpop.f32.mrb[0].mxu0
      %v535 = vadd.f32 %v266, %v534
      %v536 = vpop.f32.mrb[0].mxu0
      %v537 = vpop.f32.mrb[0].mxu0
      %v538 = vadd.f32 %v266, %v537
      %v539 = vpop.f32.mrb[0].mxu0
      %540 = vmatprep.mubr.bf16.mxu0 0
      %541 = vmatmul.mubr.bf16.gmra.mrb[0].mxu0 %v344
      %v542 = vpop.f32.mrb[0].mxu0
      %v543 = vadd.f32 %v266, %v542
      %v544 = vpop.f32.mrb[0].mxu0
      %v545 = vpop.f32.mrb[0].mxu0
      %v546 = vadd.f32 %v266, %v545
      %v547 = vpop.f32.mrb[0].mxu0
      %548 = vmatprep.mubr.bf16.mxu0 0
      %549 = vmatmul.mubr.bf16.gmra.mrb[0].mxu0 %v345
      %v550 = vpop.f32.mrb[0].mxu0
      %v551 = vadd.f32 %v266, %v550
      %v552 = vpop.f32.mrb[0].mxu0
      %v553 = vpop.f32.mrb[0].mxu0
      %v554 = vadd.f32 %v266, %v553
      %v555 = vpop.f32.mrb[0].mxu0
      %556 = vmatprep.mubr.bf16.mxu0 0
      %557 = vmatmul.mubr.bf16.gmra.mrb[0].mxu0 %v346
      %v558 = vpop.f32.mrb[0].mxu0
      %v559 = vadd.f32 %v266, %v558
      %v560 = vpop.f32.mrb[0].mxu0
      %v561 = vpop.f32.mrb[0].mxu0
      %v562 = vadd.f32 %v266, %v561
      %v563 = vpop.f32.mrb[0].mxu0
      %564 = vmatprep.mubr.bf16.mxu0 0
      %565 = vmatmul.mubr.bf16.gmra.mrb[0].mxu0 %v347
      %v566 = vpop.f32.mrb[0].mxu0
      %v567 = vadd.f32 %v266, %v566
      %v568 = vpop.f32.mrb[0].mxu0
      %v569 = vpop.f32.mrb[0].mxu0
      %v570 = vadd.f32 %v266, %v569
      %v571 = vpop.f32.mrb[0].mxu0
      %572 = vdwg.mxu0
      %v573 = vpack.c.bf16 %v450, %v447
      %v574 = vpack.c.bf16 %v458, %v455
      %v575 = vpack.c.bf16 %v466, %v463
      %v576 = vpack.c.bf16 %v474, %v471
      %v577 = vpack.c.bf16 %v482, %v479
      %v578 = vpack.c.bf16 %v490, %v487
      %v579 = vpack.c.bf16 %v498, %v495
      %v580 = vpack.c.bf16 %v506, %v503
      %v581 = vpack.c.bf16 %v514, %v511
      %v582 = vpack.c.bf16 %v522, %v519
      %v583 = vpack.c.bf16 %v530, %v527
      %v584 = vpack.c.bf16 %v538, %v535
      %v585 = vpack.c.bf16 %v546, %v543
      %v586 = vpack.c.bf16 %v554, %v551
      %v587 = vpack.c.bf16 %v562, %v559
      %v588 = vpack.c.bf16 %v570, %v567
      %v605 = vunpack.c.l.b16 %v573
      %v606 = vunpack.c.h.b16 %v573
      %v607 = vunpack.c.l.b16 %v574
      %v608 = vunpack.c.h.b16 %v574
      %v609 = vunpack.c.l.b16 %v575
      %v610 = vunpack.c.h.b16 %v575
      %v611 = vunpack.c.l.b16 %v576
      %v612 = vunpack.c.h.b16 %v576
      %v613 = vunpack.c.l.b16 %v577
      %v614 = vunpack.c.h.b16 %v577
      %v615 = vunpack.c.l.b16 %v578
      %v616 = vunpack.c.h.b16 %v578
      %v617 = vunpack.c.l.b16 %v579
      %v618 = vunpack.c.h.b16 %v579
      %v619 = vunpack.c.l.b16 %v580
      %v620 = vunpack.c.h.b16 %v580
      %v621 = vunpack.c.l.b16 %v581
      %v622 = vunpack.c.h.b16 %v581
      %v623 = vunpack.c.l.b16 %v582
      %v624 = vunpack.c.h.b16 %v582
      %v625 = vunpack.c.l.b16 %v583
      %v626 = vunpack.c.h.b16 %v583
      %v627 = vunpack.c.l.b16 %v584
      %v628 = vunpack.c.h.b16 %v584
      %v629 = vunpack.c.l.b16 %v585
      %v630 = vunpack.c.h.b16 %v585
      %v631 = vunpack.c.l.b16 %v586
      %v632 = vunpack.c.h.b16 %v586
      %v633 = vunpack.c.l.b16 %v587
      %v634 = vunpack.c.h.b16 %v587
      %v635 = vunpack.c.l.b16 %v588
      %v636 = vunpack.c.h.b16 %v588
      %v637 = vpack.c.b16 %v605, %v605
      %v638 = vpack.c.b16 %v606, %v606
      %v639 = vpack.c.b16 %v607, %v607
      %v640 = vpack.c.b16 %v608, %v608
      %v641 = vpack.c.b16 %v609, %v609
      %v642 = vpack.c.b16 %v610, %v610
      %v643 = vpack.c.b16 %v611, %v611
      %v644 = vpack.c.b16 %v612, %v612
      %v645 = vpack.c.b16 %v613, %v613
      %v646 = vpack.c.b16 %v614, %v614
      %v647 = vpack.c.b16 %v615, %v615
      %v648 = vpack.c.b16 %v616, %v616
      %v649 = vpack.c.b16 %v617, %v617
      %v650 = vpack.c.b16 %v618, %v618
      %v651 = vpack.c.b16 %v619, %v619
      %v652 = vpack.c.b16 %v620, %v620
      %v653 = vpack.c.b16 %v621, %v621
      %v654 = vpack.c.b16 %v622, %v622
      %v655 = vpack.c.b16 %v623, %v623
      %v656 = vpack.c.b16 %v624, %v624
      %v657 = vpack.c.b16 %v625, %v625
      %v658 = vpack.c.b16 %v626, %v626
      %v659 = vpack.c.b16 %v627, %v627
      %v660 = vpack.c.b16 %v628, %v628
      %v661 = vpack.c.b16 %v629, %v629
      %v662 = vpack.c.b16 %v630, %v630
      %v663 = vpack.c.b16 %v631, %v631
      %v664 = vpack.c.b16 %v632, %v632
      %v665 = vpack.c.b16 %v633, %v633
      %v666 = vpack.c.b16 %v634, %v634
      %v667 = vpack.c.b16 %v635, %v635
      %v668 = vpack.c.b16 %v636, %v636
      %701 = vst [vmem:[%s206] sm:$0xf] %v637
      %702 = vst [vmem:[%s206 + $0x4] sm:$0xf] %v638
      %703 = vst [vmem:[%s206 + $0x8] sm:$0xf] %v639
      %704 = vst [vmem:[%s206 + $0xc] sm:$0xf] %v640
      %705 = vst [vmem:[%s206 + $0x10] sm:$0xf] %v641
      %706 = vst [vmem:[%s206 + $0x14] sm:$0xf] %v642
      %707 = vst [vmem:[%s206 + $0x18] sm:$0xf] %v643
      %708 = vst [vmem:[%s206 + $0x1c] sm:$0xf] %v644
      %709 = vst [vmem:[%s206 + $0x20] sm:$0xf] %v645
      %710 = vst [vmem:[%s206 + $0x24] sm:$0xf] %v646
      %711 = vst [vmem:[%s206 + $0x28] sm:$0xf] %v647
      %712 = vst [vmem:[%s206 + $0x2c] sm:$0xf] %v648
      %713 = vst [vmem:[%s206 + $0x30] sm:$0xf] %v649
      %714 = vst [vmem:[%s206 + $0x34] sm:$0xf] %v650
      %715 = vst [vmem:[%s206 + $0x38] sm:$0xf] %v651
      %716 = vst [vmem:[%s206 + $0x3c] sm:$0xf] %v652
      %717 = vst [vmem:[%s206 + $0x40] sm:$0xf] %v653
      %718 = vst [vmem:[%s206 + $0x44] sm:$0xf] %v654
      %719 = vst [vmem:[%s206 + $0x48] sm:$0xf] %v655
      %720 = vst [vmem:[%s206 + $0x4c] sm:$0xf] %v656
      %721 = vst [vmem:[%s206 + $0x50] sm:$0xf] %v657
      %722 = vst [vmem:[%s206 + $0x54] sm:$0xf] %v658
      %723 = vst [vmem:[%s206 + $0x58] sm:$0xf] %v659
      %724 = vst [vmem:[%s206 + $0x5c] sm:$0xf] %v660
      %725 = vst [vmem:[%s206 + $0x60] sm:$0xf] %v661
      %726 = vst [vmem:[%s206 + $0x64] sm:$0xf] %v662
      %727 = vst [vmem:[%s206 + $0x68] sm:$0xf] %v663
      %728 = vst [vmem:[%s206 + $0x6c] sm:$0xf] %v664
      %729 = vst [vmem:[%s206 + $0x70] sm:$0xf] %v665
      %730 = vst [vmem:[%s206 + $0x74] sm:$0xf] %v666
      %731 = vst [vmem:[%s206 + $0x78] sm:$0xf] %v667
      %732 = vst [vmem:[%s206 + $0x7c] sm:$0xf] %v668
      %v733 = vadd.f32 %v447, %v450
      %v734 = vadd.f32 %v733, %v455
      %v735 = vadd.f32 %v734, %v458
      %v736 = vadd.f32 %v735, %v463
      %v737 = vadd.f32 %v736, %v466
      %v738 = vadd.f32 %v737, %v471
      %v739 = vadd.f32 %v738, %v474
      %v740 = vadd.f32 %v739, %v479
      %v741 = vadd.f32 %v740, %v482
      %v742 = vadd.f32 %v741, %v487
      %v743 = vadd.f32 %v742, %v490
      %v744 = vadd.f32 %v743, %v495
      %v745 = vadd.f32 %v744, %v498
      %v746 = vadd.f32 %v745, %v503
      %v747 = vadd.f32 %v746, %v506
      %v748 = vadd.f32 %v747, %v511
      %v749 = vadd.f32 %v748, %v514
      %v750 = vadd.f32 %v749, %v519
      %v751 = vadd.f32 %v750, %v522
      %v752 = vadd.f32 %v751, %v527
      %v753 = vadd.f32 %v752, %v530
      %v754 = vadd.f32 %v753, %v535
      %v755 = vadd.f32 %v754, %v538
      %v756 = vadd.f32 %v755, %v543
      %v757 = vadd.f32 %v756, %v546
      %v758 = vadd.f32 %v757, %v551
      %v759 = vadd.f32 %v758, %v554
      %v760 = vadd.f32 %v759, %v559
      %v761 = vadd.f32 %v760, %v562
      %v762 = vadd.f32 %v761, %v567
      %v763 = vadd.f32 %v762, %v570
      %v764 = vrot.slane %v763, 4
      %v765 = vadd.f32 %v763, %v764
      %v766 = vrot.slane %v765, 2
      %v767 = vadd.f32 %v765, %v766
      %v768 = vrot.slane %v767, 1
      %v769 = vadd.f32 %v767, %v768
      %v770 = vmul.f32 %v447, %v447
      %v771 = vmul.f32 %v450, %v450
      %v772 = vmul.f32 %v455, %v455
      %v773 = vmul.f32 %v458, %v458
      %v774 = vmul.f32 %v463, %v463
      %v775 = vmul.f32 %v466, %v466
      %v776 = vmul.f32 %v471, %v471
      %v777 = vmul.f32 %v474, %v474
      %v778 = vmul.f32 %v479, %v479
      %v779 = vmul.f32 %v482, %v482
      %v780 = vmul.f32 %v487, %v487
      %v781 = vmul.f32 %v490, %v490
      %v782 = vmul.f32 %v495, %v495
      %v783 = vmul.f32 %v498, %v498
      %v784 = vmul.f32 %v503, %v503
      %v785 = vmul.f32 %v506, %v506
      %v786 = vmul.f32 %v511, %v511
      %v787 = vmul.f32 %v514, %v514
      %v788 = vmul.f32 %v519, %v519
      %v789 = vmul.f32 %v522, %v522
      %v790 = vmul.f32 %v527, %v527
      %v791 = vmul.f32 %v530, %v530
      %v792 = vmul.f32 %v535, %v535
      %v793 = vmul.f32 %v538, %v538
      %v794 = vmul.f32 %v543, %v543
      %v795 = vmul.f32 %v546, %v546
      %v796 = vmul.f32 %v551, %v551
      %v797 = vmul.f32 %v554, %v554
      %v798 = vmul.f32 %v559, %v559
      %v799 = vmul.f32 %v562, %v562
      %v800 = vmul.f32 %v567, %v567
      %v801 = vmul.f32 %v570, %v570
      %v802 = vadd.f32 %v770, %v771
      %v803 = vadd.f32 %v802, %v772
      %v804 = vadd.f32 %v803, %v773
      %v805 = vadd.f32 %v804, %v774
      %v806 = vadd.f32 %v805, %v775
      %v807 = vadd.f32 %v806, %v776
      %v808 = vadd.f32 %v807, %v777
      %v809 = vadd.f32 %v808, %v778
      %v810 = vadd.f32 %v809, %v779
      %v811 = vadd.f32 %v810, %v780
      %v812 = vadd.f32 %v811, %v781
      %v813 = vadd.f32 %v812, %v782
      %v814 = vadd.f32 %v813, %v783
      %v815 = vadd.f32 %v814, %v784
      %v816 = vadd.f32 %v815, %v785
      %v817 = vadd.f32 %v816, %v786
      %v818 = vadd.f32 %v817, %v787
      %v819 = vadd.f32 %v818, %v788
      %v820 = vadd.f32 %v819, %v789
      %v821 = vadd.f32 %v820, %v790
      %v822 = vadd.f32 %v821, %v791
      %v823 = vadd.f32 %v822, %v792
      %v824 = vadd.f32 %v823, %v793
      %v825 = vadd.f32 %v824, %v794
      %v826 = vadd.f32 %v825, %v795
      %v827 = vadd.f32 %v826, %v796
      %v828 = vadd.f32 %v827, %v797
      %v829 = vadd.f32 %v828, %v798
      %v830 = vadd.f32 %v829, %v799
      %v831 = vadd.f32 %v830, %v800
      %v832 = vadd.f32 %v831, %v801
      %v833 = vrot.slane %v832, 4
      %v834 = vadd.f32 %v832, %v833
      %v835 = vrot.slane %v834, 2
      %v836 = vadd.f32 %v834, %v835
      %v837 = vrot.slane %v836, 1
      %v838 = vadd.f32 %v836, %v837
      %vm839 = vcmask 1040384
      %v840 = vsel %vm839, %v769, %v838
      %841 = vst [vmem:[%s211] sm:$0x3] %v840
      %s842 = smul.u32 32, %s16
      %p843 = scmp.lt.s32.totalorder %s842, 63
      %s844 = scalar_select %p843, %s842, 63
      %s845 = smul.addr %s844, 4
      %s846 = scalar_lea.vmem %s3, %s845
      %p847 = scmp.lt.s32.totalorder %s16, 1
      %s848 = scalar_select %p847, %s16, 1
      %s849 = smul.addr %s848, 2
      %s850 = scalar_lea.vmem %s4, %s849
      // Predicated region
      $region33: #{deformable_proj_embed_forward.2} parent=31 // pred_check
        %p851 = pneg %p102
      $region34: #{deformable_proj_embed_forward.2} parent=31 // pred_check_branch
        %853 = sbr.rel (%p851) target = $region36
      $region35: #{deformable_proj_embed_forward.2} parent=31 // pred_region
        %s854 = smul.u32 32, %s16
      $region36: #{deformable_proj_embed_forward.2} parent=31 // pred_fallthru
        _
      // Predicated region
      $region37: #{deformable_proj_embed_forward.2} parent=31 // pred_check
        %p855 = pneg %p128
      $region38: #{deformable_proj_embed_forward.2} parent=31 // pred_check_branch
        %857 = sbr.rel (%p855) target = $region40
      $region39: #{deformable_proj_embed_forward.2} parent=31 // pred_region
        _
      $region40: #{deformable_proj_embed_forward.2} parent=31 // pred_fallthru
        _
    $region32: #{deformable_proj_embed_forward.2} parent=5 // pred_fallthru
      _
    %p858 = scmp.le.s32.totalorder 2, %s11
    // Predicated region
    $region41: #{deformable_proj_embed_forward.2} parent=5 // pred_check
      %p859 = pneg %p858
    $region42: #{deformable_proj_embed_forward.2} parent=5 // pred_check_branch
      %861 = sbr.rel (%p859) target = $region44
    $region43: #{deformable_proj_embed_forward.2} parent=5 // pred_region
      %s862 = ssub.s32 %s11, 2
      // Predicated region
      $region45: #{deformable_proj_embed_forward.2} parent=43 // pred_check
        %p863 = pneg %p108
      $region46: #{deformable_proj_embed_forward.2} parent=43 // pred_check_branch
        %865 = sbr.rel (%p863) target = $region48
      $region47: #{deformable_proj_embed_forward.2} parent=43 // pred_region
        %s866 = smul.u32 32, %s17
        %p867 = scmp.lt.s32.totalorder %s866, 63
        %s868 = scalar_select %p867, %s866, 63
        %s869 = smul.addr %s868, 4
        %s870 = scalar_lea.vmem %s3, %s869
      $region48: #{deformable_proj_embed_forward.2} parent=43 // pred_fallthru
        _
      // Predicated region
      $region49: #{deformable_proj_embed_forward.2} parent=43 // pred_check
        %p871 = pneg %p134
      $region50: #{deformable_proj_embed_forward.2} parent=43 // pred_check_branch
        %873 = sbr.rel (%p871) target = $region52
      $region51: #{deformable_proj_embed_forward.2} parent=43 // pred_region
        %p874 = scmp.lt.s32.totalorder %s17, 1
        %s875 = scalar_select %p874, %s17, 1
        %s876 = smul.addr %s875, 2
        %s877 = scalar_lea.vmem %s4, %s876
      $region52: #{deformable_proj_embed_forward.2} parent=43 // pred_fallthru
        _
    $region44: #{deformable_proj_embed_forward.2} parent=5 // pred_fallthru
      _
  $region6: #{deformable_proj_embed_forward.2} parent=0 // loop_footer
    %s15 = sadd.s32 1, %s11
  $region7: #{deformable_proj_embed_forward.2} parent=0 // loop_footer_branch
    %10 = sbr.rel target = $region3
  $region8: #{deformable_proj_embed_forward.2} parent=0 // loop_exit
    _

</llo_original>
